<compile_context>
chip_gen: v7x
topology: tpu7x:2x2x1
jax: 0.10.0
libtpu: 0.0.40
codegen_flags: <defaults>
</compile_context>

<pallas_src>
import functools

import jax
import jax.numpy as jnp
from jax.experimental import pallas as pl
from jax.experimental.pallas import tpu as pltpu


# ----------------------------------------------------------------------------
# Fused encoder kernel: one grid step == (one batch tile, one transformer layer).
# Activation slab (batch_tile*N, D) is carried across layers in VMEM scratch.
# ----------------------------------------------------------------------------
def _encoder_layer_kernel(x0_ref, wqkv_ref, wo_ref, wff1_ref, wff2_ref, vec_ref,
                          o_ref, x_scr, *, n_tokens, batch_tile, heads, head_ch,
                          d_model, d_mlp):
    layer = pl.program_id(1)
    inner = heads * head_ch

    # ---- layer 0 of this tile: load the embedded activations into the carry ----
    @pl.when(layer == 0)
    def _init():
        x_scr[...] = x0_ref[0]

    def layer_norm(z, g, b):
        mu = jnp.mean(z, axis=-1, keepdims=True)
        var = jnp.mean((z - mu) ** 2, axis=-1, keepdims=True)
        return (z - mu) * jax.lax.rsqrt(var + 1e-5) * g + b

    x = x_scr[...]                                               # (rows, D) f32

    # --------- PreNorm -> multi-head self-attention -> residual ---------
    ln1_g = vec_ref[0, 0:1, :d_model]
    ln1_b = vec_ref[0, 1:2, :d_model]
    xn = layer_norm(x, ln1_g, ln1_b).astype(jnp.bfloat16)
    # Single fused QKV matmul with full lane width 3*inner (scale pre-folded
    # into the q columns of the weight).
    qkv = jnp.dot(xn, wqkv_ref[0], preferred_element_type=jnp.float32)
    q = qkv[:, 0 * inner:1 * inner].astype(jnp.bfloat16)
    k = qkv[:, 1 * inner:2 * inner].astype(jnp.bfloat16)
    v = qkv[:, 2 * inner:3 * inner].astype(jnp.bfloat16)

    # Per-sequence / per-head scores, softmax and context.  batch_tile and
    # heads are small compile-time constants -> static unroll.  Scores are
    # (N, N) per head/sequence (no block-diagonal mask needed).
    head_ctx = []
    for h in range(heads):
        c0 = h * head_ch
        seq_ctx = []
        for s in range(batch_tile):
            r0 = s * n_tokens
            qh = q[r0:r0 + n_tokens, c0:c0 + head_ch]
            kh = k[r0:r0 + n_tokens, c0:c0 + head_ch]
            vh = v[r0:r0 + n_tokens, c0:c0 + head_ch]
            dots = jnp.einsum('qd,kd->qk', qh, kh,
                              preferred_element_type=jnp.float32)     # (N, N)
            m = jnp.max(dots, axis=-1, keepdims=True)
            e = jnp.exp(dots - m)
            p = e * pl.reciprocal(jnp.sum(e, axis=-1, keepdims=True), approx=True)
            seq_ctx.append(jnp.dot(p.astype(jnp.bfloat16), vh,
                                   preferred_element_type=jnp.float32))
        head_ctx.append(jnp.concatenate(seq_ctx, axis=0))
    # One lane-concat, then a single fused (rows, inner) x (inner, D) out-proj.
    ctx = jnp.concatenate(head_ctx, axis=-1).astype(jnp.bfloat16)     # (rows, inner)

    b_out = vec_ref[0, 4:5, :d_model]
    x = x + jnp.dot(ctx, wo_ref[0], preferred_element_type=jnp.float32) + b_out

    # --------- PreNorm -> FeedForward (Linear -> GELU -> Linear) -> residual ---------
    ln2_g = vec_ref[0, 2:3, :d_model]
    ln2_b = vec_ref[0, 3:4, :d_model]
    b_ff1 = vec_ref[0, 5:6, :d_mlp]
    b_ff2 = vec_ref[0, 6:7, :d_model]
    xn2 = layer_norm(x, ln2_g, ln2_b).astype(jnp.bfloat16)
    h1 = jnp.dot(xn2, wff1_ref[0], preferred_element_type=jnp.float32) + b_ff1
    # exact (erf) GELU to match torch.nn.GELU(); evaluated once, in f32, on the
    # (rows, d_mlp) hidden only.
    h1 = 0.5 * h1 * (1.0 + jax.lax.erf(h1 * 0.7071067811865476))
    h2 = jnp.dot(h1.astype(jnp.bfloat16), wff2_ref[0],
                 preferred_element_type=jnp.float32) + b_ff2
    x = x + h2

    x_scr[...] = x

    @pl.when(layer == pl.num_programs(1) - 1)
    def _writeback():
        o_ref[0] = x.astype(o_ref.dtype)


# ----------------------------------------------------------------------------
# Wrapper: layout-only / tiny embedding prep in plain JAX, all per-layer FLOPs
# in the fused kernel.
# ----------------------------------------------------------------------------
def trans_encoder_forward(x, params, *, t_patch_size, heads, head_channels,
                          batch_tile=1):
    B, C, T = x.shape
    P = t_patch_size
    W = T // P
    N = W + 1
    D = params["w_embed"].shape[1]
    inner = heads * head_channels
    M = params["layers"][0]["wff1"].shape[1]
    depth = len(params["layers"])
    scale = float(head_channels) ** -0.5

    assert B % batch_tile == 0, "batch_tile must divide batch"
    num_tiles = B // batch_tile
    tile_rows = batch_tile * N

    # ---- patch embedding + cls token + positional embedding (tiny one-off
    # preamble; keeps these operands out of steady-state VMEM) ----
    xp = x.reshape(B, C, W, P).transpose(0, 2, 1, 3).reshape(B, W, C * P)
    h0 = xp @ params["w_embed"] + params["b_embed"]
    cls = jnp.broadcast_to(params["cls_token"], (B, 1, D))
    h0 = jnp.concatenate([cls, h0], axis=1) + params["pos_embedding"][:, :N]
    x0 = h0.reshape(num_tiles, tile_rows, D).astype(jnp.float32)
    # TODO(synk): embed_dropout / attention dropout / FFN dropout are
    # inference-time no-ops and are intentionally omitted.

    def stack(name):
        return jnp.stack([L[name] for L in params["layers"]])

    # Fused QKV weight (depth, D, 3*inner) with the attention scale folded
    # into the q columns before the bf16 cast.
    wqkv = stack("wqkv")
    wqkv = wqkv.at[:, :, :inner].multiply(scale).astype(jnp.bfloat16)
    wo = stack("wo").astype(jnp.bfloat16)            # (depth, inner, D)
    wff1 = stack("wff1").astype(jnp.bfloat16)        # (depth, D, M)
    wff2 = stack("wff2").astype(jnp.bfloat16)        # (depth, M, D)

    # Pack the 7 small per-layer vectors into one (depth, 8, vpad) slab
    # -> a single DMA per layer instead of 8 tiny ones.
    vpad = pl.cdiv(max(D, M), 128) * 128

    def padv(v):
        return jnp.pad(v, ((0, 0), (0, vpad - v.shape[-1])))

    vecs = jnp.stack([padv(stack("ln1_g")), padv(stack("ln1_b")),
                      padv(stack("ln2_g")), padv(stack("ln2_b")),
                      padv(stack("bo")), padv(stack("bff1")), padv(stack("bff2")),
                      jnp.zeros((depth, vpad), jnp.float32)], axis=1)

    kernel = functools.partial(_encoder_layer_kernel, n_tokens=N,
                               batch_tile=batch_tile, heads=heads,
                               head_ch=head_channels, d_model=D, d_mlp=M)

    out = pl.pallas_call(
        kernel,
        out_shape=jax.ShapeDtypeStruct((num_tiles, tile_rows, D), jnp.float32),
        grid=(num_tiles, depth),
        in_specs=[
            pl.BlockSpec((1, tile_rows, D), lambda b, l: (b, 0, 0)),     # x0
            pl.BlockSpec((1, D, 3 * inner), lambda b, l: (l, 0, 0)),     # wqkv
            pl.BlockSpec((1, inner, D), lambda b, l: (l, 0, 0)),         # wo
            pl.BlockSpec((1, D, M), lambda b, l: (l, 0, 0)),             # wff1
            pl.BlockSpec((1, M, D), lambda b, l: (l, 0, 0)),             # wff2
            pl.BlockSpec((1, 8, vpad), lambda b, l: (l, 0, 0)),          # packed vecs
        ],
        out_specs=pl.BlockSpec((1, tile_rows, D), lambda b, l: (b, 0, 0)),
        scratch_shapes=[pltpu.VMEM((tile_rows, D), jnp.float32)],        # layer carry
        compiler_params=pltpu.CompilerParams(
            dimension_semantics=("parallel", "arbitrary")),
    )(x0, wqkv, wo, wff1, wff2, vecs)
    return out.reshape(B, N, D)


# ----------------------------------------------------------------------------
# Pure-JAX f32 reference (for correctness check)
# ----------------------------------------------------------------------------
def reference_forward(x, params, *, t_patch_size, heads, head_channels):
    B, C, T = x.shape
    P = t_patch_size
    W = T // P
    D = params["w_embed"].shape[1]
    hd = head_channels
    xp = x.reshape(B, C, W, P).transpose(0, 2, 1, 3).reshape(B, W, C * P)
    h = xp @ params["w_embed"] + params["b_embed"]
    cls = jnp.broadcast_to(params["cls_token"], (B, 1, D))
    h = jnp.concatenate([cls, h], axis=1) + params["pos_embedding"][:, :W + 1]

    def ln(z, g, b):
        mu = z.mean(-1, keepdims=True)
        var = ((z - mu) ** 2).mean(-1, keepdims=True)
        return (z - mu) * jax.lax.rsqrt(var + 1e-5) * g + b

    for L in params["layers"]:
        z = ln(h, L["ln1_g"], L["ln1_b"])
        qkv = z @ L["wqkv"]
        inner = heads * hd
        q, k, v = qkv[..., :inner], qkv[..., inner:2 * inner], qkv[..., 2 * inner:]
        q = q.reshape(B, -1, heads, hd).transpose(0, 2, 1, 3)
        k = k.reshape(B, -1, heads, hd).transpose(0, 2, 1, 3)
        v = v.reshape(B, -1, heads, hd).transpose(0, 2, 1, 3)
        dots = jnp.einsum("bhnd,bhmd->bhnm", q, k) * (hd ** -0.5)
        attn = jax.nn.softmax(dots, axis=-1)
        o = jnp.einsum("bhnm,bhmd->bhnd", attn, v).transpose(0, 2, 1, 3).reshape(B, -1, inner)
        h = h + (o @ L["wo"] + L["bo"])
        z = ln(h, L["ln2_g"], L["ln2_b"])
        f = z @ L["wff1"] + L["bff1"]
        f = 0.5 * f * (1.0 + jax.lax.erf(f * 0.7071067811865476))
        h = h + (f @ L["wff2"] + L["bff2"])
    return h


# ----------------------------------------------------------------------------
# Deterministic parameter construction (synthetic weights, not a checkpoint)
# ----------------------------------------------------------------------------
def init_params(key, *, num_electrodes, t_patch_size, num_patches, hid, depth,
                heads, head_channels, mlp):
    inner = heads * head_channels
    patch_ch = num_electrodes * t_patch_size
    keys = jax.random.split(key, 3 + depth)
    params = {
        "w_embed": 0.05 * jax.random.normal(keys[0], (patch_ch, hid), jnp.float32),
        "b_embed": jnp.zeros((hid,), jnp.float32),
        "pos_embedding": 0.05 * jax.random.normal(keys[1], (1, num_patches + 1, hid), jnp.float32),
        "cls_token": 0.05 * jax.random.normal(keys[2], (1, 1, hid), jnp.float32),
        "layers": [],
    }
    for d in range(depth):
        lk = jax.random.split(keys[3 + d], 4)
        params["layers"].append({
            "ln1_g": jnp.ones((hid,), jnp.float32),
            "ln1_b": jnp.zeros((hid,), jnp.float32),
            "wqkv": 0.05 * jax.random.normal(lk[0], (hid, 3 * inner), jnp.float32),
            "wo": 0.05 * jax.random.normal(lk[1], (inner, hid), jnp.float32),
            "bo": jnp.zeros((hid,), jnp.float32),
            "ln2_g": jnp.ones((hid,), jnp.float32),
            "ln2_b": jnp.zeros((hid,), jnp.float32),
            "wff1": 0.05 * jax.random.normal(lk[2], (hid, mlp), jnp.float32),
            "bff1": jnp.zeros((mlp,), jnp.float32),
            "wff2": 0.05 * jax.random.normal(lk[3], (mlp, hid), jnp.float32),
            "bff2": jnp.zeros((hid,), jnp.float32),
        })
    return params


if __name__ == "__main__":
    # Small configuration consistent with the module's constraints
    # (chunk_size % t_patch_size == 0).
    B = 2
    NUM_ELECTRODES = 4     # "c"
    CHUNK_SIZE = 16        # "t"
    T_PATCH = 4            # -> num_patches = 4, seq len with cls = 5
    HID = 32
    DEPTH = 2
    HEADS = 4
    HEAD_CH = 8
    MLP = 64
    NUM_PATCHES = CHUNK_SIZE // T_PATCH

    key = jax.random.PRNGKey(0)
    kx, kp = jax.random.split(key)
    x = jax.random.normal(kx, (B, NUM_ELECTRODES, CHUNK_SIZE), jnp.float32)
    params = init_params(kp, num_electrodes=NUM_ELECTRODES, t_patch_size=T_PATCH,
                         num_patches=NUM_PATCHES, hid=HID, depth=DEPTH,
                         heads=HEADS, head_channels=HEAD_CH, mlp=MLP)

    out = trans_encoder_forward(x, params, t_patch_size=T_PATCH,
                                heads=HEADS, head_channels=HEAD_CH,
                                batch_tile=1)
    out = jax.block_until_ready(out)

    ref = reference_forward(x, params, t_patch_size=T_PATCH,
                            heads=HEADS, head_channels=HEAD_CH)
    assert out.shape == (B, NUM_PATCHES + 1, HID)
    # bf16 MXU operands (f32 accumulation) + approx softmax reciprocal ->
    # compare against the f32 reference with a correspondingly looser tolerance.
    assert jnp.allclose(out, ref, rtol=2e-2, atol=2e-2), "mismatch vs JAX reference"

    print("KERNEL_OK")
</pallas_src>

<mosaic_0001>
module attributes {stable_mosaic.version = 11 : i64} {
  func.func @_encoder_layer_kernel(%arg0: i32, %arg1: i32, %arg2: memref<1x5x32xf32, #tpu.memory_space<vmem>>, %arg3: memref<1x32x96xbf16, #tpu.memory_space<vmem>>, %arg4: memref<1x32x32xbf16, #tpu.memory_space<vmem>>, %arg5: memref<1x32x64xbf16, #tpu.memory_space<vmem>>, %arg6: memref<1x64x32xbf16, #tpu.memory_space<vmem>>, %arg7: memref<1x8x128xf32, #tpu.memory_space<vmem>>, %arg8: memref<1x5x32xf32, #tpu.memory_space<vmem>>, %arg9: memref<5x32xf32, #tpu.memory_space<vmem>>) attributes {dimension_semantics = [#tpu.dimension_semantics<parallel>, #tpu.dimension_semantics<arbitrary>], iteration_bounds = array<i64: 2, 2>, scalar_prefetch = 0 : i64, scratch_operands = 1 : i64, tpu.core_type = #tpu.core_type<tc>, window_params = [{transform_indices = @transform_0, window_bounds = array<i64: 1, 5, 32>}, {transform_indices = @transform_1, window_bounds = array<i64: 1, 32, 96>}, {transform_indices = @transform_2, window_bounds = array<i64: 1, 32, 32>}, {transform_indices = @transform_3, window_bounds = array<i64: 1, 32, 64>}, {transform_indices = @transform_4, window_bounds = array<i64: 1, 64, 32>}, {transform_indices = @transform_5, window_bounds = array<i64: 1, 8, 128>}, {transform_indices = @transform_6, window_bounds = array<i64: 1, 5, 32>}]} {
    %c0_i32 = arith.constant 0 : i32
    %0 = arith.cmpi eq, %arg1, %c0_i32 : i32
    %1 = arith.extui %0 : i1 to i32
    %c0_i32_0 = arith.constant 0 : i32
    %2 = arith.cmpi ne, %1, %c0_i32_0 : i32
    scf.if %2 {
      %c0_64 = arith.constant 0 : index
      %c0_65 = arith.constant 0 : index
      %c0_66 = arith.constant 0 : index
      %169 = vector.load %arg2[%c0_64, %c0_65, %c0_66] : memref<1x5x32xf32, #tpu.memory_space<vmem>>, vector<1x5x32xf32>
      %170 = vector.shape_cast %169 : vector<1x5x32xf32> to vector<5x32xf32>
      %c0_67 = arith.constant 0 : index
      %c0_68 = arith.constant 0 : index
      %171 = vector.load %arg9[%c0_67, %c0_68] : memref<5x32xf32, #tpu.memory_space<vmem>>, vector<5x32xf32>
      tpu.vector_store %arg9[%c0_67, %c0_68], %170 {strides = array<i32>} : memref<5x32xf32, #tpu.memory_space<vmem>>, vector<5x32xf32>,
    } else {
    }
    %c0 = arith.constant 0 : index
    %c0_1 = arith.constant 0 : index
    %3 = vector.load %arg9[%c0, %c0_1] : memref<5x32xf32, #tpu.memory_space<vmem>>, vector<5x32xf32>
    %c0_2 = arith.constant 0 : index
    %c0_3 = arith.constant 0 : index
    %c0_4 = arith.constant 0 : index
    %4 = vector.load %arg7[%c0_2, %c0_3, %c0_4] : memref<1x8x128xf32, #tpu.memory_space<vmem>>, vector<1x1x32xf32>
    %5 = vector.shape_cast %4 : vector<1x1x32xf32> to vector<1x32xf32>
    %c0_5 = arith.constant 0 : index
    %c1 = arith.constant 1 : index
    %c0_6 = arith.constant 0 : index
    %6 = vector.load %arg7[%c0_5, %c1, %c0_6] : memref<1x8x128xf32, #tpu.memory_space<vmem>>, vector<1x1x32xf32>
    %7 = vector.shape_cast %6 : vector<1x1x32xf32> to vector<1x32xf32>
    %cst = arith.constant dense<0.000000e+00> : vector<5xf32>
    %8 = vector.multi_reduction <add>, %3, %cst [1] : vector<5x32xf32> to vector<5xf32>
    %9 = vector.shape_cast %8 : vector<5xf32> to vector<5x1xf32>
    %cst_7 = arith.constant 3.200000e+01 : f32
    %10 = vector.broadcast %cst_7 : f32 to vector<5x1xf32>
    %11 = arith.divf %9, %10 : vector<5x1xf32>
    %12 = vector.broadcast %11 : vector<5x1xf32> to vector<5x32xf32>
    %13 = arith.subf %3, %12 : vector<5x32xf32>
    %14 = arith.mulf %13, %13 : vector<5x32xf32>
    %cst_8 = arith.constant dense<0.000000e+00> : vector<5xf32>
    %15 = vector.multi_reduction <add>, %14, %cst_8 [1] : vector<5x32xf32> to vector<5xf32>
    %16 = vector.shape_cast %15 : vector<5xf32> to vector<5x1xf32>
    %cst_9 = arith.constant 3.200000e+01 : f32
    %17 = vector.broadcast %cst_9 : f32 to vector<5x1xf32>
    %18 = arith.divf %16, %17 : vector<5x1xf32>
    %19 = vector.broadcast %11 : vector<5x1xf32> to vector<5x32xf32>
    %20 = arith.subf %3, %19 : vector<5x32xf32>
    %cst_10 = arith.constant 9.99999974E-6 : f32
    %21 = vector.broadcast %cst_10 : f32 to vector<5x1xf32>
    %22 = arith.addf %18, %21 : vector<5x1xf32>
    %23 = math.rsqrt %22 : vector<5x1xf32>
    %24 = vector.broadcast %23 : vector<5x1xf32> to vector<5x32xf32>
    %25 = arith.mulf %20, %24 : vector<5x32xf32>
    %26 = vector.broadcast %5 : vector<1x32xf32> to vector<5x32xf32>
    %27 = arith.mulf %25, %26 : vector<5x32xf32>
    %28 = vector.broadcast %7 : vector<1x32xf32> to vector<5x32xf32>
    %29 = arith.addf %27, %28 : vector<5x32xf32>
    %30 = arith.truncf %29 : vector<5x32xf32> to vector<5x32xbf16>
    %c0_11 = arith.constant 0 : index
    %c0_12 = arith.constant 0 : index
    %c0_13 = arith.constant 0 : index
    %31 = vector.load %arg3[%c0_11, %c0_12, %c0_13] : memref<1x32x96xbf16, #tpu.memory_space<vmem>>, vector<1x32x96xbf16>
    %32 = vector.shape_cast %31 : vector<1x32x96xbf16> to vector<32x96xbf16>
    %cst_14 = arith.constant dense<0.000000e+00> : vector<5x96xf32>
    %33 = tpu.matmul %30, %32, %cst_14 {dimension_numbers = #tpu.dot_dimension_numbers<[1], [0], [0], [1], [0, 0, 1, 1], [], []>} : vector<5x32xbf16>, vector<32x96xbf16>, vector<5x96xf32> -> vector<5x96xf32>
    %34 = vector.extract_strided_slice %33 {offsets = [0, 0], sizes = [5, 32], strides = [1, 1]} : vector<5x96xf32> to vector<5x32xf32>
    %35 = arith.truncf %34 : vector<5x32xf32> to vector<5x32xbf16>
    %36 = vector.extract_strided_slice %33 {offsets = [0, 32], sizes = [5, 32], strides = [1, 1]} : vector<5x96xf32> to vector<5x32xf32>
    %37 = arith.truncf %36 : vector<5x32xf32> to vector<5x32xbf16>
    %38 = vector.extract_strided_slice %33 {offsets = [0, 64], sizes = [5, 32], strides = [1, 1]} : vector<5x96xf32> to vector<5x32xf32>
    %39 = arith.truncf %38 : vector<5x32xf32> to vector<5x32xbf16>
    %40 = vector.extract_strided_slice %35 {offsets = [0, 0], sizes = [5, 8], strides = [1, 1]} : vector<5x32xbf16> to vector<5x8xbf16>
    %41 = vector.extract_strided_slice %37 {offsets = [0, 0], sizes = [5, 8], strides = [1, 1]} : vector<5x32xbf16> to vector<5x8xbf16>
    %42 = vector.extract_strided_slice %39 {offsets = [0, 0], sizes = [5, 8], strides = [1, 1]} : vector<5x32xbf16> to vector<5x8xbf16>
    "tpu.trace_start"() <{level = 10 : i32, message = "qd,kd->qk"}> : () -> ()
    %cst_15 = arith.constant dense<0.000000e+00> : vector<5x5xf32>
    %43 = tpu.matmul %40, %41, %cst_15 {dimension_numbers = #tpu.dot_dimension_numbers<[1], [1], [0], [0], [0, 0, 1, 0], [], []>} : vector<5x8xbf16>, vector<5x8xbf16>, vector<5x5xf32> -> vector<5x5xf32>
    "tpu.trace_stop"() : () -> ()
    %cst_16 = arith.constant dense<0xFF800000> : vector<5xf32>
    %44 = vector.multi_reduction <maximumf>, %43, %cst_16 [1] : vector<5x5xf32> to vector<5xf32>
    %45 = vector.shape_cast %44 : vector<5xf32> to vector<5x1xf32>
    %46 = vector.broadcast %45 : vector<5x1xf32> to vector<5x5xf32>
    %47 = arith.subf %43, %46 : vector<5x5xf32>
    %48 = math.exp %47 : vector<5x5xf32>
    %cst_17 = arith.constant dense<0.000000e+00> : vector<5xf32>
    %49 = vector.multi_reduction <add>, %48, %cst_17 [1] : vector<5x5xf32> to vector<5xf32>
    %50 = vector.shape_cast %49 : vector<5xf32> to vector<5x1xf32>
    %51 = tpu.reciprocal %50 {approx = true} : vector<5x1xf32> -> vector<5x1xf32>
    %52 = vector.broadcast %51 : vector<5x1xf32> to vector<5x5xf32>
    %53 = arith.mulf %48, %52 : vector<5x5xf32>
    %54 = arith.truncf %53 : vector<5x5xf32> to vector<5x5xbf16>
    %cst_18 = arith.constant dense<0.000000e+00> : vector<5x8xf32>
    %55 = tpu.matmul %54, %42, %cst_18 {dimension_numbers = #tpu.dot_dimension_numbers<[1], [0], [0], [1], [0, 0, 1, 1], [], []>} : vector<5x5xbf16>, vector<5x8xbf16>, vector<5x8xf32> -> vector<5x8xf32>
    %56 = vector.extract_strided_slice %35 {offsets = [0, 8], sizes = [5, 8], strides = [1, 1]} : vector<5x32xbf16> to vector<5x8xbf16>
    %57 = vector.extract_strided_slice %37 {offsets = [0, 8], sizes = [5, 8], strides = [1, 1]} : vector<5x32xbf16> to vector<5x8xbf16>
    %58 = vector.extract_strided_slice %39 {offsets = [0, 8], sizes = [5, 8], strides = [1, 1]} : vector<5x32xbf16> to vector<5x8xbf16>
    "tpu.trace_start"() <{level = 10 : i32, message = "qd,kd->qk"}> : () -> ()
    %cst_19 = arith.constant dense<0.000000e+00> : vector<5x5xf32>
    %59 = tpu.matmul %56, %57, %cst_19 {dimension_numbers = #tpu.dot_dimension_numbers<[1], [1], [0], [0], [0, 0, 1, 0], [], []>} : vector<5x8xbf16>, vector<5x8xbf16>, vector<5x5xf32> -> vector<5x5xf32>
    "tpu.trace_stop"() : () -> ()
    %cst_20 = arith.constant dense<0xFF800000> : vector<5xf32>
    %60 = vector.multi_reduction <maximumf>, %59, %cst_20 [1] : vector<5x5xf32> to vector<5xf32>
    %61 = vector.shape_cast %60 : vector<5xf32> to vector<5x1xf32>
    %62 = vector.broadcast %61 : vector<5x1xf32> to vector<5x5xf32>
    %63 = arith.subf %59, %62 : vector<5x5xf32>
    %64 = math.exp %63 : vector<5x5xf32>
    %cst_21 = arith.constant dense<0.000000e+00> : vector<5xf32>
    %65 = vector.multi_reduction <add>, %64, %cst_21 [1] : vector<5x5xf32> to vector<5xf32>
    %66 = vector.shape_cast %65 : vector<5xf32> to vector<5x1xf32>
    %67 = tpu.reciprocal %66 {approx = true} : vector<5x1xf32> -> vector<5x1xf32>
    %68 = vector.broadcast %67 : vector<5x1xf32> to vector<5x5xf32>
    %69 = arith.mulf %64, %68 : vector<5x5xf32>
    %70 = arith.truncf %69 : vector<5x5xf32> to vector<5x5xbf16>
    %cst_22 = arith.constant dense<0.000000e+00> : vector<5x8xf32>
    %71 = tpu.matmul %70, %58, %cst_22 {dimension_numbers = #tpu.dot_dimension_numbers<[1], [0], [0], [1], [0, 0, 1, 1], [], []>} : vector<5x5xbf16>, vector<5x8xbf16>, vector<5x8xf32> -> vector<5x8xf32>
    %72 = vector.extract_strided_slice %35 {offsets = [0, 16], sizes = [5, 8], strides = [1, 1]} : vector<5x32xbf16> to vector<5x8xbf16>
    %73 = vector.extract_strided_slice %37 {offsets = [0, 16], sizes = [5, 8], strides = [1, 1]} : vector<5x32xbf16> to vector<5x8xbf16>
    %74 = vector.extract_strided_slice %39 {offsets = [0, 16], sizes = [5, 8], strides = [1, 1]} : vector<5x32xbf16> to vector<5x8xbf16>
    "tpu.trace_start"() <{level = 10 : i32, message = "qd,kd->qk"}> : () -> ()
    %cst_23 = arith.constant dense<0.000000e+00> : vector<5x5xf32>
    %75 = tpu.matmul %72, %73, %cst_23 {dimension_numbers = #tpu.dot_dimension_numbers<[1], [1], [0], [0], [0, 0, 1, 0], [], []>} : vector<5x8xbf16>, vector<5x8xbf16>, vector<5x5xf32> -> vector<5x5xf32>
    "tpu.trace_stop"() : () -> ()
    %cst_24 = arith.constant dense<0xFF800000> : vector<5xf32>
    %76 = vector.multi_reduction <maximumf>, %75, %cst_24 [1] : vector<5x5xf32> to vector<5xf32>
    %77 = vector.shape_cast %76 : vector<5xf32> to vector<5x1xf32>
    %78 = vector.broadcast %77 : vector<5x1xf32> to vector<5x5xf32>
    %79 = arith.subf %75, %78 : vector<5x5xf32>
    %80 = math.exp %79 : vector<5x5xf32>
    %cst_25 = arith.constant dense<0.000000e+00> : vector<5xf32>
    %81 = vector.multi_reduction <add>, %80, %cst_25 [1] : vector<5x5xf32> to vector<5xf32>
    %82 = vector.shape_cast %81 : vector<5xf32> to vector<5x1xf32>
    %83 = tpu.reciprocal %82 {approx = true} : vector<5x1xf32> -> vector<5x1xf32>
    %84 = vector.broadcast %83 : vector<5x1xf32> to vector<5x5xf32>
    %85 = arith.mulf %80, %84 : vector<5x5xf32>
    %86 = arith.truncf %85 : vector<5x5xf32> to vector<5x5xbf16>
    %cst_26 = arith.constant dense<0.000000e+00> : vector<5x8xf32>
    %87 = tpu.matmul %86, %74, %cst_26 {dimension_numbers = #tpu.dot_dimension_numbers<[1], [0], [0], [1], [0, 0, 1, 1], [], []>} : vector<5x5xbf16>, vector<5x8xbf16>, vector<5x8xf32> -> vector<5x8xf32>
    %88 = vector.extract_strided_slice %35 {offsets = [0, 24], sizes = [5, 8], strides = [1, 1]} : vector<5x32xbf16> to vector<5x8xbf16>
    %89 = vector.extract_strided_slice %37 {offsets = [0, 24], sizes = [5, 8], strides = [1, 1]} : vector<5x32xbf16> to vector<5x8xbf16>
    %90 = vector.extract_strided_slice %39 {offsets = [0, 24], sizes = [5, 8], strides = [1, 1]} : vector<5x32xbf16> to vector<5x8xbf16>
    "tpu.trace_start"() <{level = 10 : i32, message = "qd,kd->qk"}> : () -> ()
    %cst_27 = arith.constant dense<0.000000e+00> : vector<5x5xf32>
    %91 = tpu.matmul %88, %89, %cst_27 {dimension_numbers = #tpu.dot_dimension_numbers<[1], [1], [0], [0], [0, 0, 1, 0], [], []>} : vector<5x8xbf16>, vector<5x8xbf16>, vector<5x5xf32> -> vector<5x5xf32>
    "tpu.trace_stop"() : () -> ()
    %cst_28 = arith.constant dense<0xFF800000> : vector<5xf32>
    %92 = vector.multi_reduction <maximumf>, %91, %cst_28 [1] : vector<5x5xf32> to vector<5xf32>
    %93 = vector.shape_cast %92 : vector<5xf32> to vector<5x1xf32>
    %94 = vector.broadcast %93 : vector<5x1xf32> to vector<5x5xf32>
    %95 = arith.subf %91, %94 : vector<5x5xf32>
    %96 = math.exp %95 : vector<5x5xf32>
    %cst_29 = arith.constant dense<0.000000e+00> : vector<5xf32>
    %97 = vector.multi_reduction <add>, %96, %cst_29 [1] : vector<5x5xf32> to vector<5xf32>
    %98 = vector.shape_cast %97 : vector<5xf32> to vector<5x1xf32>
    %99 = tpu.reciprocal %98 {approx = true} : vector<5x1xf32> -> vector<5x1xf32>
    %100 = vector.broadcast %99 : vector<5x1xf32> to vector<5x5xf32>
    %101 = arith.mulf %96, %100 : vector<5x5xf32>
    %102 = arith.truncf %101 : vector<5x5xf32> to vector<5x5xbf16>
    %cst_30 = arith.constant dense<0.000000e+00> : vector<5x8xf32>
    %103 = tpu.matmul %102, %90, %cst_30 {dimension_numbers = #tpu.dot_dimension_numbers<[1], [0], [0], [1], [0, 0, 1, 1], [], []>} : vector<5x5xbf16>, vector<5x8xbf16>, vector<5x8xf32> -> vector<5x8xf32>
    %104 = tpu.concatenate %55, %71, %87, %103 in 1 : vector<5x8xf32>, vector<5x8xf32>, vector<5x8xf32>, vector<5x8xf32> -> vector<5x32xf32>
    %105 = arith.truncf %104 : vector<5x32xf32> to vector<5x32xbf16>
    %c0_31 = arith.constant 0 : index
    %c4 = arith.constant 4 : index
    %c0_32 = arith.constant 0 : index
    %106 = vector.load %arg7[%c0_31, %c4, %c0_32] : memref<1x8x128xf32, #tpu.memory_space<vmem>>, vector<1x1x32xf32>
    %107 = vector.shape_cast %106 : vector<1x1x32xf32> to vector<1x32xf32>
    %c0_33 = arith.constant 0 : index
    %c0_34 = arith.constant 0 : index
    %c0_35 = arith.constant 0 : index
    %108 = vector.load %arg4[%c0_33, %c0_34, %c0_35] : memref<1x32x32xbf16, #tpu.memory_space<vmem>>, vector<1x32x32xbf16>
    %109 = vector.shape_cast %108 : vector<1x32x32xbf16> to vector<32x32xbf16>
    %cst_36 = arith.constant dense<0.000000e+00> : vector<5x32xf32>
    %110 = tpu.matmul %105, %109, %cst_36 {dimension_numbers = #tpu.dot_dimension_numbers<[1], [0], [0], [1], [0, 0, 1, 1], [], []>} : vector<5x32xbf16>, vector<32x32xbf16>, vector<5x32xf32> -> vector<5x32xf32>
    %111 = arith.addf %3, %110 : vector<5x32xf32>
    %112 = vector.broadcast %107 : vector<1x32xf32> to vector<5x32xf32>
    %113 = arith.addf %111, %112 : vector<5x32xf32>
    %c0_37 = arith.constant 0 : index
    %c2 = arith.constant 2 : index
    %c0_38 = arith.constant 0 : index
    %114 = vector.load %arg7[%c0_37, %c2, %c0_38] : memref<1x8x128xf32, #tpu.memory_space<vmem>>, vector<1x1x32xf32>
    %115 = vector.shape_cast %114 : vector<1x1x32xf32> to vector<1x32xf32>
    %c0_39 = arith.constant 0 : index
    %c3 = arith.constant 3 : index
    %c0_40 = arith.constant 0 : index
    %116 = vector.load %arg7[%c0_39, %c3, %c0_40] : memref<1x8x128xf32, #tpu.memory_space<vmem>>, vector<1x1x32xf32>
    %117 = vector.shape_cast %116 : vector<1x1x32xf32> to vector<1x32xf32>
    %c0_41 = arith.constant 0 : index
    %c5 = arith.constant 5 : index
    %c0_42 = arith.constant 0 : index
    %118 = vector.load %arg7[%c0_41, %c5, %c0_42] : memref<1x8x128xf32, #tpu.memory_space<vmem>>, vector<1x1x64xf32>
    %119 = vector.shape_cast %118 : vector<1x1x64xf32> to vector<1x64xf32>
    %c0_43 = arith.constant 0 : index
    %c6 = arith.constant 6 : index
    %c0_44 = arith.constant 0 : index
    %120 = vector.load %arg7[%c0_43, %c6, %c0_44] : memref<1x8x128xf32, #tpu.memory_space<vmem>>, vector<1x1x32xf32>
    %121 = vector.shape_cast %120 : vector<1x1x32xf32> to vector<1x32xf32>
    %cst_45 = arith.constant dense<0.000000e+00> : vector<5xf32>
    %122 = vector.multi_reduction <add>, %113, %cst_45 [1] : vector<5x32xf32> to vector<5xf32>
    %123 = vector.shape_cast %122 : vector<5xf32> to vector<5x1xf32>
    %cst_46 = arith.constant 3.200000e+01 : f32
    %124 = vector.broadcast %cst_46 : f32 to vector<5x1xf32>
    %125 = arith.divf %123, %124 : vector<5x1xf32>
    %126 = vector.broadcast %125 : vector<5x1xf32> to vector<5x32xf32>
    %127 = arith.subf %113, %126 : vector<5x32xf32>
    %128 = arith.mulf %127, %127 : vector<5x32xf32>
    %cst_47 = arith.constant dense<0.000000e+00> : vector<5xf32>
    %129 = vector.multi_reduction <add>, %128, %cst_47 [1] : vector<5x32xf32> to vector<5xf32>
    %130 = vector.shape_cast %129 : vector<5xf32> to vector<5x1xf32>
    %cst_48 = arith.constant 3.200000e+01 : f32
    %131 = vector.broadcast %cst_48 : f32 to vector<5x1xf32>
    %132 = arith.divf %130, %131 : vector<5x1xf32>
    %133 = vector.broadcast %125 : vector<5x1xf32> to vector<5x32xf32>
    %134 = arith.subf %113, %133 : vector<5x32xf32>
    %cst_49 = arith.constant 9.99999974E-6 : f32
    %135 = vector.broadcast %cst_49 : f32 to vector<5x1xf32>
    %136 = arith.addf %132, %135 : vector<5x1xf32>
    %137 = math.rsqrt %136 : vector<5x1xf32>
    %138 = vector.broadcast %137 : vector<5x1xf32> to vector<5x32xf32>
    %139 = arith.mulf %134, %138 : vector<5x32xf32>
    %140 = vector.broadcast %115 : vector<1x32xf32> to vector<5x32xf32>
    %141 = arith.mulf %139, %140 : vector<5x32xf32>
    %142 = vector.broadcast %117 : vector<1x32xf32> to vector<5x32xf32>
    %143 = arith.addf %141, %142 : vector<5x32xf32>
    %144 = arith.truncf %143 : vector<5x32xf32> to vector<5x32xbf16>
    %c0_50 = arith.constant 0 : index
    %c0_51 = arith.constant 0 : index
    %c0_52 = arith.constant 0 : index
    %145 = vector.load %arg5[%c0_50, %c0_51, %c0_52] : memref<1x32x64xbf16, #tpu.memory_space<vmem>>, vector<1x32x64xbf16>
    %146 = vector.shape_cast %145 : vector<1x32x64xbf16> to vector<32x64xbf16>
    %cst_53 = arith.constant dense<0.000000e+00> : vector<5x64xf32>
    %147 = tpu.matmul %144, %146, %cst_53 {dimension_numbers = #tpu.dot_dimension_numbers<[1], [0], [0], [1], [0, 0, 1, 1], [], []>} : vector<5x32xbf16>, vector<32x64xbf16>, vector<5x64xf32> -> vector<5x64xf32>
    %148 = vector.broadcast %119 : vector<1x64xf32> to vector<5x64xf32>
    %149 = arith.addf %147, %148 : vector<5x64xf32>
    %cst_54 = arith.constant 5.000000e-01 : f32
    %150 = vector.broadcast %cst_54 : f32 to vector<5x64xf32>
    %151 = arith.mulf %150, %149 : vector<5x64xf32>
    %cst_55 = arith.constant 0.707106769 : f32
    %152 = vector.broadcast %cst_55 : f32 to vector<5x64xf32>
    %153 = arith.mulf %149, %152 : vector<5x64xf32>
    %154 = math.erf %153 : vector<5x64xf32>
    %cst_56 = arith.constant 1.000000e+00 : f32
    %155 = vector.broadcast %cst_56 : f32 to vector<5x64xf32>
    %156 = arith.addf %155, %154 : vector<5x64xf32>
    %157 = arith.mulf %151, %156 : vector<5x64xf32>
    %158 = arith.truncf %157 : vector<5x64xf32> to vector<5x64xbf16>
    %c0_57 = arith.constant 0 : index
    %c0_58 = arith.constant 0 : index
    %c0_59 = arith.constant 0 : index
    %159 = vector.load %arg6[%c0_57, %c0_58, %c0_59] : memref<1x64x32xbf16, #tpu.memory_space<vmem>>, vector<1x64x32xbf16>
    %160 = vector.shape_cast %159 : vector<1x64x32xbf16> to vector<64x32xbf16>
    %cst_60 = arith.constant dense<0.000000e+00> : vector<5x32xf32>
    %161 = tpu.matmul %158, %160, %cst_60 {dimension_numbers = #tpu.dot_dimension_numbers<[1], [0], [0], [1], [0, 0, 1, 1], [], []>} : vector<5x64xbf16>, vector<64x32xbf16>, vector<5x32xf32> -> vector<5x32xf32>
    %162 = vector.broadcast %121 : vector<1x32xf32> to vector<5x32xf32>
    %163 = arith.addf %161, %162 : vector<5x32xf32>
    %164 = arith.addf %113, %163 : vector<5x32xf32>
    %c0_61 = arith.constant 0 : index
    %c0_62 = arith.constant 0 : index
    %165 = vector.load %arg9[%c0_61, %c0_62] : memref<5x32xf32, #tpu.memory_space<vmem>>, vector<5x32xf32>
    tpu.vector_store %arg9[%c0_61, %c0_62], %164 {strides = array<i32>} : memref<5x32xf32, #tpu.memory_space<vmem>>, vector<5x32xf32>,
    %c1_i32 = arith.constant 1 : i32
    %166 = arith.cmpi eq, %arg1, %c1_i32 : i32
    %167 = arith.extui %166 : i1 to i32
    %c0_i32_63 = arith.constant 0 : i32
    %168 = arith.cmpi ne, %167, %c0_i32_63 : i32
    scf.if %168 {
      %c0_64 = arith.constant 0 : index
      %c0_65 = arith.constant 0 : index
      %c0_66 = arith.constant 0 : index
      %169 = vector.load %arg8[%c0_64, %c0_65, %c0_66] : memref<1x5x32xf32, #tpu.memory_space<vmem>>, vector<1x5x32xf32>
      %170 = vector.shape_cast %169 : vector<1x5x32xf32> to vector<5x32xf32>
      %171 = vector.shape_cast %164 : vector<5x32xf32> to vector<1x5x32xf32>
      tpu.vector_store %arg8[%c0_64, %c0_65, %c0_66], %171 {strides = array<i32>} : memref<1x5x32xf32, #tpu.memory_space<vmem>>, vector<1x5x32xf32>,
    } else {
    }
    return
  }
  func.func @transform_0(%arg0: i32, %arg1: i32) -> (i32, i32, i32) {
    %c0_i32 = arith.constant 0 : i32
    %c0_i32_0 = arith.constant 0 : i32
    %c0_i32_1 = arith.constant 0 : i32
    return %arg0, %c0_i32, %c0_i32_0 : i32, i32, i32
  }
  func.func @transform_1(%arg0: i32, %arg1: i32) -> (i32, i32, i32) {
    %c0_i32 = arith.constant 0 : i32
    %c0_i32_0 = arith.constant 0 : i32
    %c0_i32_1 = arith.constant 0 : i32
    return %arg1, %c0_i32, %c0_i32_0 : i32, i32, i32
  }
  func.func @transform_2(%arg0: i32, %arg1: i32) -> (i32, i32, i32) {
    %c0_i32 = arith.constant 0 : i32
    %c0_i32_0 = arith.constant 0 : i32
    %c0_i32_1 = arith.constant 0 : i32
    return %arg1, %c0_i32, %c0_i32_0 : i32, i32, i32
  }
  func.func @transform_3(%arg0: i32, %arg1: i32) -> (i32, i32, i32) {
    %c0_i32 = arith.constant 0 : i32
    %c0_i32_0 = arith.constant 0 : i32
    %c0_i32_1 = arith.constant 0 : i32
    return %arg1, %c0_i32, %c0_i32_0 : i32, i32, i32
  }
  func.func @transform_4(%arg0: i32, %arg1: i32) -> (i32, i32, i32) {
    %c0_i32 = arith.constant 0 : i32
    %c0_i32_0 = arith.constant 0 : i32
    %c0_i32_1 = arith.constant 0 : i32
    return %arg1, %c0_i32, %c0_i32_0 : i32, i32, i32
  }
  func.func @transform_5(%arg0: i32, %arg1: i32) -> (i32, i32, i32) {
    %c0_i32 = arith.constant 0 : i32
    %c0_i32_0 = arith.constant 0 : i32
    %c0_i32_1 = arith.constant 0 : i32
    return %arg1, %c0_i32, %c0_i32_0 : i32, i32, i32
  }
  func.func @transform_6(%arg0: i32, %arg1: i32) -> (i32, i32, i32) {
    %c0_i32 = arith.constant 0 : i32
    %c0_i32_0 = arith.constant 0 : i32
    %c0_i32_1 = arith.constant 0 : i32
    return %arg0, %c0_i32, %c0_i32_0 : i32, i32, i32
  }
}

</mosaic_0001>

<llo_original>
// kernel: tpu_custom_call.1
$region0: #{tpu_custom_call.1}
  #allocation0 [shape = 'u32[]', space=smem, size = 0x4, offset = 0x4, fixed_abs, tag = 'smem constant byte address 0x4 - core index']
  #allocation1 [shape = 'u32[144,128]{1,0:T(1,128)}', space=vmem, size = 0x12000, scoped, tag = 'internal scratch']
  #allocation2 [shape = 'f32[5,32]{1,0:T(8,128)}', space=vmem, size = 0x1000, scoped, tag = 'scratch operand']
  %s0 = inlined_call_operand.vmem [shape: f32[2,5,32], index: 0, kind: input, shape index: {}]
  %s1 = inlined_call_operand.vmem [shape: bf16[2,32,96], index: 1, kind: input, shape index: {}]
  %s2 = inlined_call_operand.vmem [shape: bf16[2,32,32], index: 2, kind: input, shape index: {}]
  %s3 = inlined_call_operand.vmem [shape: bf16[2,32,64], index: 3, kind: input, shape index: {}]
  %s4 = inlined_call_operand.vmem [shape: bf16[2,64,32], index: 4, kind: input, shape index: {}]
  %s5 = inlined_call_operand.hbm [shape: f32[2,8,128], index: 5, kind: input, shape index: {}]
  %s6 = inlined_call_operand.vmem [shape: f32[2,5,32], index: 6, kind: output, shape index: {}]
  %s7 = sld [smem:[#allocation0]]
  $region69: #{tpu_custom_call.1} parent=0
    _
  %s9 = ssub.s32 1, %s7
  %s10 = scalar_select 0, %s9, %s7
  $region1: #{tpu_custom_call.1} parent=0
    #allocation3 [shape = 'u8[8192]{0}', space=vmem, size = 0x2000, scoped, tag = 'input window, operand 5']
    #allocation4 [shape = 's32[2]{0}', space=sflag, size = 0x8, scoped, tag = 'scoped memory for tpu_custom_call.1']
    %11 = vsyncpa [#allocation4], 0
    %s12 = scalar_lea.sflag [#allocation4], 1
    %13 = vsyncpa %s12, 0
    loop: start=0, step=1, limit=6
    $region2: #{tpu_custom_call.1} parent=1 // loop_pre_header
      _
    $region3: #{tpu_custom_call.1} parent=1 // loop_header
      %s15 = sphi 0, %s19
      %p16 = scmp.ge.s32.totalorder %s15, 6
      %s22 = sphi 0, %s34
      %s23 = sphi 0, %s30
      %s24 = sphi 0, %s22
      %s25 = sphi 0, %s23
      %s26 = sphi 0, %s24
      %s27 = sphi 0, %s25
      %s37 = sphi 0, %s39
      %s40 = sphi 0, %s37
      %s41 = sphi 0, %s40
      %s57 = sphi 0, %s41
      %s63 = sphi 0, %s65
      %s66 = sphi 0, %s63
      %s67 = sphi 0, %s66
      %s83 = sphi 0, %s67
      %s89 = sphi 0, %s91
      %s92 = sphi 0, %s89
      %s93 = sphi 0, %s92
      %s109 = sphi 0, %s93
      %s115 = sphi 0, %s117
      %s118 = sphi 0, %s115
      %s119 = sphi 0, %s118
      %s135 = sphi 0, %s119
      %s141 = sphi 0, %s143
      %s144 = sphi 0, %s141
      %s145 = sphi 0, %s144
      %s161 = sphi 0, %s145
      %s167 = sphi 0, %s169
      %s170 = sphi 0, %s167
      %s171 = sphi 0, %s170
      %s187 = sphi 0, %s171
      %s193 = sphi 0, %s195
      %s196 = sphi 0, %s193
      %s197 = sphi 0, %s196
      %s213 = sphi 0, %s197
    $region4: #{tpu_custom_call.1} parent=1 // loop_header_branch
      %18 = sbr.rel (%p16) target = $region8
    $region5: #{tpu_custom_call.1} parent=1 // loop_body
      %s20 = ssub.s32 %s15, 1
      %s21 = ssub.s32 %s15, 2
      %s28 = sadd.s32 1, %s23
      %p29 = scmp.ge.s32.totalorder %s28, 2
      %s30 = scalar_select %p29, 0, %s28
      %s31 = sadd.s32 1, %s22
      %s32 = scalar_select %p29, %s31, %s22
      %p33 = scmp.ge.s32.totalorder %s32, 2
      %s34 = scalar_select %p33, 0, %s32
      %s35 = ssub.s32 %s22, %s34
      %p36 = scmp.eq.s32.totalorder %s35, 0
      %s38 = sadd.s32 %s37, 1
      %s39 = scalar_select %p36, %s37, %s38
      %p42 = pneg %p36
      %p43 = scmp.eq.s32.totalorder %s15, 3
      %p44 = por %p42, %p43
      %p45 = scmp.ne.s32.totalorder %s37, %s40
      %p46 = scmp.eq.s32.totalorder %s15, 0
      %p47 = por %p45, %p46
      %p48 = scmp.ne.s32.totalorder %s37, %s40
      %p49 = scmp.eq.s32.totalorder %s20, 3
      %p50 = por %p48, %p49
      %p51 = scmp.ne.s32.totalorder %s40, %s41
      %p52 = scmp.eq.s32.totalorder %s20, 0
      %p53 = por %p51, %p52
      %p54 = scmp.ne.s32.totalorder %s40, %s41
      %p55 = scmp.eq.s32.totalorder %s21, 3
      %p56 = por %p54, %p55
      %p58 = scmp.ne.s32.totalorder %s41, %s57
      %p59 = scmp.eq.s32.totalorder %s21, 0
      %p60 = por %p58, %p59
      %s61 = ssub.s32 %s23, %s30
      %p62 = scmp.eq.s32.totalorder %s61, 0
      %s64 = sadd.s32 %s63, 1
      %s65 = scalar_select %p62, %s63, %s64
      %p68 = pneg %p62
      %p69 = scmp.eq.s32.totalorder %s15, 3
      %p70 = por %p68, %p69
      %p71 = scmp.ne.s32.totalorder %s63, %s66
      %p72 = scmp.eq.s32.totalorder %s15, 0
      %p73 = por %p71, %p72
      %p74 = scmp.ne.s32.totalorder %s63, %s66
      %p75 = scmp.eq.s32.totalorder %s20, 3
      %p76 = por %p74, %p75
      %p77 = scmp.ne.s32.totalorder %s66, %s67
      %p78 = scmp.eq.s32.totalorder %s20, 0
      %p79 = por %p77, %p78
      %p80 = scmp.ne.s32.totalorder %s66, %s67
      %p81 = scmp.eq.s32.totalorder %s21, 3
      %p82 = por %p80, %p81
      %p84 = scmp.ne.s32.totalorder %s67, %s83
      %p85 = scmp.eq.s32.totalorder %s21, 0
      %p86 = por %p84, %p85
      %s87 = ssub.s32 %s23, %s30
      %p88 = scmp.eq.s32.totalorder %s87, 0
      %s90 = sadd.s32 %s89, 1
      %s91 = scalar_select %p88, %s89, %s90
      %p94 = pneg %p88
      %p95 = scmp.eq.s32.totalorder %s15, 3
      %p96 = por %p94, %p95
      %p97 = scmp.ne.s32.totalorder %s89, %s92
      %p98 = scmp.eq.s32.totalorder %s15, 0
      %p99 = por %p97, %p98
      %p100 = scmp.ne.s32.totalorder %s89, %s92
      %p101 = scmp.eq.s32.totalorder %s20, 3
      %p102 = por %p100, %p101
      %p103 = scmp.ne.s32.totalorder %s92, %s93
      %p104 = scmp.eq.s32.totalorder %s20, 0
      %p105 = por %p103, %p104
      %p106 = scmp.ne.s32.totalorder %s92, %s93
      %p107 = scmp.eq.s32.totalorder %s21, 3
      %p108 = por %p106, %p107
      %p110 = scmp.ne.s32.totalorder %s93, %s109
      %p111 = scmp.eq.s32.totalorder %s21, 0
      %p112 = por %p110, %p111
      %s113 = ssub.s32 %s23, %s30
      %p114 = scmp.eq.s32.totalorder %s113, 0
      %s116 = sadd.s32 %s115, 1
      %s117 = scalar_select %p114, %s115, %s116
      %p120 = pneg %p114
      %p121 = scmp.eq.s32.totalorder %s15, 3
      %p122 = por %p120, %p121
      %p123 = scmp.ne.s32.totalorder %s115, %s118
      %p124 = scmp.eq.s32.totalorder %s15, 0
      %p125 = por %p123, %p124
      %p126 = scmp.ne.s32.totalorder %s115, %s118
      %p127 = scmp.eq.s32.totalorder %s20, 3
      %p128 = por %p126, %p127
      %p129 = scmp.ne.s32.totalorder %s118, %s119
      %p130 = scmp.eq.s32.totalorder %s20, 0
      %p131 = por %p129, %p130
      %p132 = scmp.ne.s32.totalorder %s118, %s119
      %p133 = scmp.eq.s32.totalorder %s21, 3
      %p134 = por %p132, %p133
      %p136 = scmp.ne.s32.totalorder %s119, %s135
      %p137 = scmp.eq.s32.totalorder %s21, 0
      %p138 = por %p136, %p137
      %s139 = ssub.s32 %s23, %s30
      %p140 = scmp.eq.s32.totalorder %s139, 0
      %s142 = sadd.s32 %s141, 1
      %s143 = scalar_select %p140, %s141, %s142
      %p146 = pneg %p140
      %p147 = scmp.eq.s32.totalorder %s15, 3
      %p148 = por %p146, %p147
      %p149 = scmp.ne.s32.totalorder %s141, %s144
      %p150 = scmp.eq.s32.totalorder %s15, 0
      %p151 = por %p149, %p150
      %p152 = scmp.ne.s32.totalorder %s141, %s144
      %p153 = scmp.eq.s32.totalorder %s20, 3
      %p154 = por %p152, %p153
      %p155 = scmp.ne.s32.totalorder %s144, %s145
      %p156 = scmp.eq.s32.totalorder %s20, 0
      %p157 = por %p155, %p156
      %p158 = scmp.ne.s32.totalorder %s144, %s145
      %p159 = scmp.eq.s32.totalorder %s21, 3
      %p160 = por %p158, %p159
      %p162 = scmp.ne.s32.totalorder %s145, %s161
      %p163 = scmp.eq.s32.totalorder %s21, 0
      %p164 = por %p162, %p163
      %s165 = ssub.s32 %s23, %s30
      %p166 = scmp.eq.s32.totalorder %s165, 0
      %s168 = sadd.s32 %s167, 1
      %s169 = scalar_select %p166, %s167, %s168
      %p172 = pneg %p166
      %p173 = scmp.eq.s32.totalorder %s15, 3
      %p174 = por %p172, %p173
      %p175 = scmp.ne.s32.totalorder %s167, %s170
      %p176 = scmp.eq.s32.totalorder %s15, 0
      %p177 = por %p175, %p176
      %p178 = scmp.ne.s32.totalorder %s167, %s170
      %p179 = scmp.eq.s32.totalorder %s20, 3
      %p180 = por %p178, %p179
      %p181 = scmp.ne.s32.totalorder %s170, %s171
      %p182 = scmp.eq.s32.totalorder %s20, 0
      %p183 = por %p181, %p182
      %p184 = scmp.ne.s32.totalorder %s170, %s171
      %p185 = scmp.eq.s32.totalorder %s21, 3
      %p186 = por %p184, %p185
      %p188 = scmp.ne.s32.totalorder %s171, %s187
      %p189 = scmp.eq.s32.totalorder %s21, 0
      %p190 = por %p188, %p189
      %s191 = ssub.s32 %s22, %s34
      %p192 = scmp.eq.s32.totalorder %s191, 0
      %s194 = sadd.s32 %s193, 1
      %s195 = scalar_select %p192, %s193, %s194
      %p198 = pneg %p192
      %p199 = scmp.eq.s32.totalorder %s15, 3
      %p200 = por %p198, %p199
      %p201 = scmp.ne.s32.totalorder %s193, %s196
      %p202 = scmp.eq.s32.totalorder %s15, 0
      %p203 = por %p201, %p202
      %p204 = scmp.ne.s32.totalorder %s193, %s196
      %p205 = scmp.eq.s32.totalorder %s20, 3
      %p206 = por %p204, %p205
      %p207 = scmp.ne.s32.totalorder %s196, %s197
      %p208 = scmp.eq.s32.totalorder %s20, 0
      %p209 = por %p207, %p208
      %p210 = scmp.ne.s32.totalorder %s196, %s197
      %p211 = scmp.eq.s32.totalorder %s21, 3
      %p212 = por %p210, %p211
      %p214 = scmp.ne.s32.totalorder %s197, %s213
      %p215 = scmp.eq.s32.totalorder %s21, 0
      %p216 = por %p214, %p215
      %p217 = scmp.le.s32.totalorder 1, %s15
      %p218 = scmp.lt.s32.totalorder %s15, 5
      %p219 = pnand %p217, %p218
      %p220 = pneg %p219
      // Predicated region
      $region9: #{tpu_custom_call.1} parent=5 // pred_check
        _
      $region10: #{tpu_custom_call.1} parent=5 // pred_check_branch
        %222 = sbr.rel (%p219) target = $region12
      $region11: #{tpu_custom_call.1} parent=5 // pred_region
        %s223 = ssub.s32 %s15, 1
      $region12: #{tpu_custom_call.1} parent=5 // pred_fallthru
        _
      %p224 = scmp.lt.s32.totalorder %s15, 4
      // Predicated region
      $region13: #{tpu_custom_call.1} parent=5 // pred_check
        %p225 = pneg %p224
      $region14: #{tpu_custom_call.1} parent=5 // pred_check_branch
        %227 = sbr.rel (%p225) target = $region16
      $region15: #{tpu_custom_call.1} parent=5 // pred_region
        // Predicated region
        $region17: #{tpu_custom_call.1} parent=15 // pred_check
          %p228 = pneg %p47
        $region18: #{tpu_custom_call.1} parent=15 // pred_check_branch
          %230 = sbr.rel (%p228) target = $region20
        $region19: #{tpu_custom_call.1} parent=15 // pred_region
          %p231 = scmp.lt.s32.totalorder %s22, 1
          %s232 = scalar_select %p231, %s22, 1
          %s233 = smul.addr %s232, 8
          %s234 = scalar_lea.vmem %s0, %s233
        $region20: #{tpu_custom_call.1} parent=15 // pred_fallthru
          _
        // Predicated region
        $region21: #{tpu_custom_call.1} parent=15 // pred_check
          %p235 = pneg %p73
        $region22: #{tpu_custom_call.1} parent=15 // pred_check_branch
          %237 = sbr.rel (%p235) target = $region24
        $region23: #{tpu_custom_call.1} parent=15 // pred_region
          %p238 = scmp.lt.s32.totalorder %s23, 1
          %s239 = scalar_select %p238, %s23, 1
          %s240 = smul.addr %s239, 4
          %s241 = smul.addr %s240, 4
          %s242 = scalar_lea.vmem %s1, %s241
        $region24: #{tpu_custom_call.1} parent=15 // pred_fallthru
          _
        // Predicated region
        $region25: #{tpu_custom_call.1} parent=15 // pred_check
          %p243 = pneg %p99
        $region26: #{tpu_custom_call.1} parent=15 // pred_check_branch
          %245 = sbr.rel (%p243) target = $region28
        $region27: #{tpu_custom_call.1} parent=15 // pred_region
          %p246 = scmp.lt.s32.totalorder %s23, 1
          %s247 = scalar_select %p246, %s23, 1
          %s248 = smul.addr %s247, 4
          %s249 = smul.addr %s248, 4
          %s250 = scalar_lea.vmem %s2, %s249
        $region28: #{tpu_custom_call.1} parent=15 // pred_fallthru
          _
        // Predicated region
        $region29: #{tpu_custom_call.1} parent=15 // pred_check
          %p251 = pneg %p125
        $region30: #{tpu_custom_call.1} parent=15 // pred_check_branch
          %253 = sbr.rel (%p251) target = $region32
        $region31: #{tpu_custom_call.1} parent=15 // pred_region
          %p254 = scmp.lt.s32.totalorder %s23, 1
          %s255 = scalar_select %p254, %s23, 1
          %s256 = smul.addr %s255, 4
          %s257 = smul.addr %s256, 4
          %s258 = scalar_lea.vmem %s3, %s257
        $region32: #{tpu_custom_call.1} parent=15 // pred_fallthru
          _
        // Predicated region
        $region33: #{tpu_custom_call.1} parent=15 // pred_check
          %p259 = pneg %p151
        $region34: #{tpu_custom_call.1} parent=15 // pred_check_branch
          %261 = sbr.rel (%p259) target = $region36
        $region35: #{tpu_custom_call.1} parent=15 // pred_region
          %p262 = scmp.lt.s32.totalorder %s23, 1
          %s263 = scalar_select %p262, %s23, 1
          %s264 = smul.addr %s263, 8
          %s265 = smul.addr %s264, 4
          %s266 = scalar_lea.vmem %s4, %s265
        $region36: #{tpu_custom_call.1} parent=15 // pred_fallthru
          _
        // Predicated region
        $region37: #{tpu_custom_call.1} parent=15 // pred_check
          %p267 = pneg %p177
        $region38: #{tpu_custom_call.1} parent=15 // pred_check_branch
          %269 = sbr.rel (%p267) target = $region40
        $region39: #{tpu_custom_call.1} parent=15 // pred_region
          %s270 = sand.u32 %s167, 1
          %s271 = scalar_lea.sflag [#allocation4], %s270
          %s272 = sand.u32 %s167, 1
          %s273 = smul.addr %s272, 8
          %s274 = scalar_lea.vmem [#allocation3], %s273
          %s276 = ssub.s32 128, 128
          %277 = vsyncadd %s271, %s276
          %s278 = smul.addr %s23, 128
          %s279 = scalar_lea.hbm %s5, %s278
          %s281 = sshll.u32 %s274, 4
          %s282 = int_to_ptr.vmem [resolvable:$true] %s281
          %284 = dma.hbm_to_vmem [thread:$0]  %s279, 128, %s282, %s271
        $region40: #{tpu_custom_call.1} parent=15 // pred_fallthru
          _
      $region16: #{tpu_custom_call.1} parent=5 // pred_fallthru
        _
      %p285 = scmp.le.s32.totalorder 1, %s15
      %p286 = scmp.lt.s32.totalorder %s15, 5
      %p287 = pnand %p285, %p286
      %p288 = pneg %p287
      // Predicated region
      $region41: #{tpu_custom_call.1} parent=5 // pred_check
        _
      $region42: #{tpu_custom_call.1} parent=5 // pred_check_branch
        %290 = sbr.rel (%p287) target = $region44
      $region43: #{tpu_custom_call.1} parent=5 // pred_region
        %s291 = ssub.s32 %s15, 1
        %s292 = sand.u32 %s170, 1
        %s293 = scalar_lea.sflag [#allocation4], %s292
        %s294 = sand.u32 %s170, 1
        %s295 = smul.addr %s294, 8
        %s296 = scalar_lea.vmem [#allocation3], %s295
        // Predicated region
        $region45: #{tpu_custom_call.1} parent=43 // pred_check
          %p297 = pneg %p183
        $region46: #{tpu_custom_call.1} parent=43 // pred_check_branch
          %299 = sbr.rel (%p297) target = $region48
        $region47: #{tpu_custom_call.1} parent=43 // pred_region
          %300 = dma.done %s293, 128
        $region48: #{tpu_custom_call.1} parent=43 // pred_fallthru
          _
        %p301 = scmp.lt.s32.totalorder %s24, 1
        %s302 = scalar_select %p301, %s24, 1
        %s303 = smul.addr %s302, 8
        %s304 = scalar_lea.vmem %s0, %s303
        %p305 = pneg %p53
        %p306 = pneg %p50
        %p307 = scmp.lt.s32.totalorder %s25, 1
        %s308 = scalar_select %p307, %s25, 1
        %s309 = smul.addr %s308, 4
        %s310 = smul.addr %s309, 4
        %s311 = scalar_lea.vmem %s1, %s310
        %p312 = pneg %p79
        %p313 = pneg %p76
        %p314 = scmp.lt.s32.totalorder %s25, 1
        %s315 = scalar_select %p314, %s25, 1
        %s316 = smul.addr %s315, 4
        %s317 = smul.addr %s316, 4
        %s318 = scalar_lea.vmem %s2, %s317
        %p319 = pneg %p105
        %p320 = pneg %p102
        %p321 = scmp.lt.s32.totalorder %s25, 1
        %s322 = scalar_select %p321, %s25, 1
        %s323 = smul.addr %s322, 4
        %s324 = smul.addr %s323, 4
        %s325 = scalar_lea.vmem %s3, %s324
        %p326 = pneg %p131
        %p327 = pneg %p128
        %p328 = scmp.lt.s32.totalorder %s25, 1
        %s329 = scalar_select %p328, %s25, 1
        %s330 = smul.addr %s329, 8
        %s331 = smul.addr %s330, 4
        %s332 = scalar_lea.vmem %s4, %s331
        %p333 = pneg %p157
        %p334 = pneg %p154
        %s335 = sand.u32 %s170, 1
        %s336 = scalar_lea.sflag [#allocation4], %s335
        %s337 = sand.u32 %s170, 1
        %s338 = smul.addr %s337, 8
        %s339 = scalar_lea.vmem [#allocation3], %s338
        %p340 = pneg %p183
        %p341 = pneg %p180
        %p342 = pneg %p209
        %p343 = pneg %p206
        %p344 = scmp.lt.s32.totalorder %s24, 1
        %s345 = scalar_select %p344, %s24, 1
        %s346 = smul.addr %s345, 8
        %s347 = scalar_lea.vmem %s6, %s346
        %p348 = scmp.lt.s32.totalorder %s24, 1
        %s349 = scalar_select %p348, %s24, 1
        %s350 = smul.addr %s349, 8
        %s351 = scalar_lea.vmem %s0, %s350
        %p352 = scmp.lt.s32.totalorder %s25, 1
        %s353 = scalar_select %p352, %s25, 1
        %s354 = smul.addr %s353, 4
        %s355 = smul.addr %s354, 4
        %s356 = scalar_lea.vmem %s1, %s355
        %p357 = scmp.lt.s32.totalorder %s25, 1
        %s358 = scalar_select %p357, %s25, 1
        %s359 = smul.addr %s358, 4
        %s360 = smul.addr %s359, 4
        %s361 = scalar_lea.vmem %s2, %s360
        %p362 = scmp.lt.s32.totalorder %s25, 1
        %s363 = scalar_select %p362, %s25, 1
        %s364 = smul.addr %s363, 4
        %s365 = smul.addr %s364, 4
        %s366 = scalar_lea.vmem %s3, %s365
        %p367 = scmp.lt.s32.totalorder %s25, 1
        %s368 = scalar_select %p367, %s25, 1
        %s369 = smul.addr %s368, 8
        %s370 = smul.addr %s369, 4
        %s371 = scalar_lea.vmem %s4, %s370
        %p372 = scmp.lt.s32.totalorder %s24, 1
        %s373 = scalar_select %p372, %s24, 1
        %s374 = smul.addr %s373, 8
        %s375 = scalar_lea.vmem %s6, %s374
        %p377 = scmp.eq.s32.totalorder %s25, 0
        // Predicated region
        $region49: #{tpu_custom_call.1} parent=43 // pred_check
          %p378 = pneg %p377
        $region50: #{tpu_custom_call.1} parent=43 // pred_check_branch
          %380 = sbr.rel (%p378) target = $region52
        $region51: #{tpu_custom_call.1} parent=43 // pred_region
          %v381 = vld [vmem:[%s351] sm:$0x1f]
          %vm382 = vcmask 258048
          %383 = vst.msk [vmem:[#allocation2] sm:$0x1f] %vm382, %v381
        $region52: #{tpu_custom_call.1} parent=43 // pred_fallthru
          _
        %v384 = vld [vmem:[#allocation2] sm:$0x1f]
        %v385 = vld [vmem:[%s296] sm:$0x1]
        %v386 = vld [vmem:[%s296 + $0x1] sm:$0x1]
        %vm387 = vcmask 258048
        %v388 = vsel %vm387, %v384, 0.0
        %389 = vadd.xlane.f32.xlu0 %v388
        %v390 = vpop.xlane.xlu0 %389
        %v391 = vrcp.pop 32.0
        %v392 = vmul.f32 %v390, %v391
        %v393 = vsub.f32 %v384, %v392
        %v394 = vmul.f32 %v393, %v393
        %v395 = vsel %vm387, %v394, 0.0
        %396 = vadd.xlane.f32.xlu0 %v395
        %v397 = vpop.xlane.xlu0 %396
        %v398 = vmul.f32 %v397, %v391
        %v399 = vadd.f32 %v398, 1e-05
        %v400 = vrsqrt.pop %v399
        %v401 = vmul.f32 %v393, %v400
        %v402 = vlaneseq
        %v403 = vshrl.u32 %v402, 7
        %v404 = vsub.s32 0, %v403
        %v405 = vrot.slane %v385, %v404
        %v406 = vmul.f32 %v401, %v405
        %v407 = vlaneseq
        %v408 = vshrl.u32 %v407, 7
        %v409 = vsub.s32 0, %v408
        %v410 = vrot.slane %v386, %v409
        %v411 = vadd.f32 %v406, %v410
        %v412 = vpack.c.bf16 %v411, %v411
        %v413 = vld [vmem:[%s356] sm:$0xf]
        %v414 = vld [vmem:[%s356 + $0x4] sm:$0xf]
        %v415 = vld [vmem:[%s356 + $0x8] sm:$0xf]
        %v416 = vld [vmem:[%s356 + $0xc] sm:$0xf]
        %v421 = vunpack.c.l.b16 %v413
        %v422 = vunpack.c.l.b16 %v414
        %v423 = vunpack.c.l.b16 %v415
        %v424 = vunpack.c.l.b16 %v416
        %v425 = vpack.c.b16 %v422, %v421
        %v426 = vpack.c.b16 %v424, %v423
        %vm429 = vcmask 261120
        %v431 = vsel %vm429, %v412, 0
        %433 = vmatprep.subr.bf16.mxu0 0
        %434 = vmatpush1.bf16.msra.mxu0 %v425
        %435 = vmatprep.subr.bf16.mxu0 0
        %436 = vmatpush1.bf16.msra.mxu0 %v426
        %437 = vmatprep.subr.bf16.mxu0 0
        %438 = vmatpush1.bf16.msra.mxu0 0
        %439 = vmatprep.subr.bf16.mxu0 0
        %440 = vmatpush1.bf16.msra.mxu0 0
        %441 = vmatprep.subr.bf16.mxu0 0
        %442 = vmatpush1.bf16.msra.mxu0 0
        %443 = vmatprep.subr.bf16.mxu0 0
        %444 = vmatpush1.bf16.msra.mxu0 0
        %445 = vmatprep.subr.bf16.mxu0 0
        %446 = vmatpush1.bf16.msra.mxu0 0
        %447 = vmatprep.subr.bf16.mxu0 0
        %448 = vmatpush1.bf16.msra.mxu0 0
        %449 = vmatprep.subr.bf16.mxu0 0
        %450 = vmatpush1.bf16.msra.mxu0 0
        %451 = vmatprep.subr.bf16.mxu0 0
        %452 = vmatpush1.bf16.msra.mxu0 0
        %453 = vmatprep.subr.bf16.mxu0 0
        %454 = vmatpush1.bf16.msra.mxu0 0
        %455 = vmatprep.subr.bf16.mxu0 0
        %456 = vmatpush1.bf16.msra.mxu0 0
        %457 = vmatprep.subr.bf16.mxu0 0
        %458 = vmatpush1.bf16.msra.mxu0 0
        %459 = vmatprep.subr.bf16.mxu0 0
        %460 = vmatpush1.bf16.msra.mxu0 0
        %461 = vmatprep.subr.bf16.mxu0 0
        %462 = vmatpush1.bf16.msra.mxu0 0
        %463 = vmatprep.subr.bf16.mxu0 0
        %464 = vmatpush1.bf16.msra.mxu0 0
        %465 = vmatprep.mubr.bf16.mxu0 0
        %466 = vmatmul.mubr.bf16.gmra.mrb[0].mxu0 %v431
        %v467 = vpop.f32.mrb[0].mxu0
        %v468 = vadd.f32 0.0, %v467
        %v469 = vpop.f32.mrb[0].mxu0
        %v470 = vpop.f32.mrb[0].mxu0
        %v471 = vpop.f32.mrb[0].mxu0
        %472 = vdwg.mxu0
        %v473 = vpack.c.bf16 %v468, %v468
        %475 = vrot.lane.b32.xlu0 %v473, 96
        %v476 = vpop.permute.xlu0 %475
        %vm477 = vcmask 64512
        %v479 = vsel %vm477, %v473, 0
        %v482 = vsel %vm477, %v476, 0
        %484 = vmatprep.subr.bf16.mxu0 0
        %485 = vmatpush1.bf16.xpose.msra.mxu0 %v482
        %486 = vmatprep.subr.bf16.mxu0 0
        %487 = vmatpush1.bf16.xpose.msra.mxu0 0
        %488 = vmatprep.subr.bf16.mxu0 0
        %489 = vmatpush1.bf16.xpose.msra.mxu0 0
        %490 = vmatprep.subr.bf16.mxu0 0
        %491 = vmatpush1.bf16.xpose.msra.mxu0 0
        %492 = vmatprep.subr.bf16.mxu0 0
        %493 = vmatpush1.bf16.xpose.msra.mxu0 0
        %494 = vmatprep.subr.bf16.mxu0 0
        %495 = vmatpush1.bf16.xpose.msra.mxu0 0
        %496 = vmatprep.subr.bf16.mxu0 0
        %497 = vmatpush1.bf16.xpose.msra.mxu0 0
        %498 = vmatprep.subr.bf16.mxu0 0
        %499 = vmatpush1.bf16.xpose.msra.mxu0 0
        %500 = vmatprep.subr.bf16.mxu0 0
        %501 = vmatpush1.bf16.xpose.msra.mxu0 0
        %502 = vmatprep.subr.bf16.mxu0 0
        %503 = vmatpush1.bf16.xpose.msra.mxu0 0
        %504 = vmatprep.subr.bf16.mxu0 0
        %505 = vmatpush1.bf16.xpose.msra.mxu0 0
        %506 = vmatprep.subr.bf16.mxu0 0
        %507 = vmatpush1.bf16.xpose.msra.mxu0 0
        %508 = vmatprep.subr.bf16.mxu0 0
        %509 = vmatpush1.bf16.xpose.msra.mxu0 0
        %510 = vmatprep.subr.bf16.mxu0 0
        %511 = vmatpush1.bf16.xpose.msra.mxu0 0
        %512 = vmatprep.subr.bf16.mxu0 0
        %513 = vmatpush1.bf16.xpose.msra.mxu0 0
        %514 = vmatprep.subr.bf16.mxu0 0
        %515 = vmatpush1.bf16.xpose.msra.mxu0 0
        %516 = vmatprep.mubr.bf16.mxu0 0
        %517 = vmatmul.mubr.bf16.gmra.mrb[0].mxu0 %v479
        %v518 = vpop.f32.mrb[0].mxu0
        %v519 = vadd.f32 0.0, %v518
        %v520 = vpop.f32.mrb[0].mxu0
        %v521 = vpop.f32.mrb[0].mxu0
        %v522 = vpop.f32.mrb[0].mxu0
        %523 = vdwg.mxu0
        %vm524 = vcmask 36864
        %v525 = vsel %vm524, %v519, -inf
        %526 = vmax.xlane.f32.xlu0 %v525
        %v527 = vpop.xlane.xlu0 %526
        %v528 = vsub.f32 %v519, %v527
        %v529 = vmul.f32 %v528, 1.442695
        %v530 = vpow.pop %v529
        %v531 = vsel %vm524, %v530, 0.0
        %532 = vadd.xlane.f32.xlu0 %v531
        %v533 = vpop.xlane.xlu0 %532
        %v534 = vrcp.pop %v533
        %v535 = vmul.f32 %v530, %v534
        %v536 = vpack.c.bf16 %v535, %v535
        %537 = vrot.lane.b32.xlu0 %v473, 64
        %v538 = vpop.permute.xlu0 %537
        %vm539 = vcmask 39936
        %v541 = vsel %vm539, %v536, 0
        %vm543 = vcmask 1041408
        %vm544 = vcmask 1042432
        %v545 = vsel %vm543, 4294967295, 65535
        %v546 = vsel %vm544, %v545, 0
        %v548 = vand.u32 %v538, %v546
        %550 = vmatprep.subr.bf16.mxu0 0
        %551 = vmatpush1.bf16.msra.mxu0 %v548
        %552 = vmatprep.subr.bf16.mxu0 0
        %553 = vmatpush1.bf16.msra.mxu0 0
        %554 = vmatprep.subr.bf16.mxu0 0
        %555 = vmatpush1.bf16.msra.mxu0 0
        %556 = vmatprep.subr.bf16.mxu0 0
        %557 = vmatpush1.bf16.msra.mxu0 0
        %558 = vmatprep.subr.bf16.mxu0 0
        %559 = vmatpush1.bf16.msra.mxu0 0
        %560 = vmatprep.subr.bf16.mxu0 0
        %561 = vmatpush1.bf16.msra.mxu0 0
        %562 = vmatprep.subr.bf16.mxu0 0
        %563 = vmatpush1.bf16.msra.mxu0 0
        %564 = vmatprep.subr.bf16.mxu0 0
        %565 = vmatpush1.bf16.msra.mxu0 0
        %566 = vmatprep.subr.bf16.mxu0 0
        %567 = vmatpush1.bf16.msra.mxu0 0
        %568 = vmatprep.subr.bf16.mxu0 0
        %569 = vmatpush1.bf16.msra.mxu0 0
        %570 = vmatprep.subr.bf16.mxu0 0
        %571 = vmatpush1.bf16.msra.mxu0 0
        %572 = vmatprep.subr.bf16.mxu0 0
        %573 = vmatpush1.bf16.msra.mxu0 0
        %574 = vmatprep.subr.bf16.mxu0 0
        %575 = vmatpush1.bf16.msra.mxu0 0
        %576 = vmatprep.subr.bf16.mxu0 0
        %577 = vmatpush1.bf16.msra.mxu0 0
        %578 = vmatprep.subr.bf16.mxu0 0
        %579 = vmatpush1.bf16.msra.mxu0 0
        %580 = vmatprep.subr.bf16.mxu0 0
        %581 = vmatpush1.bf16.msra.mxu0 0
        %582 = vmatprep.mubr.bf16.mxu0 0
        %583 = vmatmul.mubr.bf16.gmra.mrb[0].mxu0 %v541
        %v584 = vpop.f32.mrb[0].mxu0
        %v585 = vadd.f32 0.0, %v584
        %v586 = vpop.f32.mrb[0].mxu0
        %v587 = vpop.f32.mrb[0].mxu0
        %v588 = vpop.f32.mrb[0].mxu0
        %589 = vdwg.mxu0
        %590 = vrot.lane.b32.xlu0 %v473, 120
        %v591 = vpop.permute.xlu0 %590
        %592 = vrot.lane.b32.xlu0 %v473, 88
        %v593 = vpop.permute.xlu0 %592
        %v595 = vsel %vm477, %v591, 0
        %v598 = vsel %vm477, %v593, 0
        %600 = vmatprep.subr.bf16.mxu0 0
        %601 = vmatpush1.bf16.xpose.msra.mxu0 %v598
        %602 = vmatprep.subr.bf16.mxu0 0
        %603 = vmatpush1.bf16.xpose.msra.mxu0 0
        %604 = vmatprep.subr.bf16.mxu0 0
        %605 = vmatpush1.bf16.xpose.msra.mxu0 0
        %606 = vmatprep.subr.bf16.mxu0 0
        %607 = vmatpush1.bf16.xpose.msra.mxu0 0
        %608 = vmatprep.subr.bf16.mxu0 0
        %609 = vmatpush1.bf16.xpose.msra.mxu0 0
        %610 = vmatprep.subr.bf16.mxu0 0
        %611 = vmatpush1.bf16.xpose.msra.mxu0 0
        %612 = vmatprep.subr.bf16.mxu0 0
        %613 = vmatpush1.bf16.xpose.msra.mxu0 0
        %614 = vmatprep.subr.bf16.mxu0 0
        %615 = vmatpush1.bf16.xpose.msra.mxu0 0
        %616 = vmatprep.subr.bf16.mxu0 0
        %617 = vmatpush1.bf16.xpose.msra.mxu0 0
        %618 = vmatprep.subr.bf16.mxu0 0
        %619 = vmatpush1.bf16.xpose.msra.mxu0 0
        %620 = vmatprep.subr.bf16.mxu0 0
        %621 = vmatpush1.bf16.xpose.msra.mxu0 0
        %622 = vmatprep.subr.bf16.mxu0 0
        %623 = vmatpush1.bf16.xpose.msra.mxu0 0
        %624 = vmatprep.subr.bf16.mxu0 0
        %625 = vmatpush1.bf16.xpose.msra.mxu0 0
        %626 = vmatprep.subr.bf16.mxu0 0
        %627 = vmatpush1.bf16.xpose.msra.mxu0 0
        %628 = vmatprep.subr.bf16.mxu0 0
        %629 = vmatpush1.bf16.xpose.msra.mxu0 0
        %630 = vmatprep.subr.bf16.mxu0 0
        %631 = vmatpush1.bf16.xpose.msra.mxu0 0
        %632 = vmatprep.mubr.bf16.mxu0 0
        %633 = vmatmul.mubr.bf16.gmra.mrb[0].mxu0 %v595
        %v634 = vpop.f32.mrb[0].mxu0
        %v635 = vadd.f32 0.0, %v634
        %v636 = vpop.f32.mrb[0].mxu0
        %v637 = vpop.f32.mrb[0].mxu0
        %v638 = vpop.f32.mrb[0].mxu0
        %639 = vdwg.mxu0
        %v640 = vsel %vm524, %v635, -inf
        %641 = vmax.xlane.f32.xlu0 %v640
        %v642 = vpop.xlane.xlu0 %641
        %v643 = vsub.f32 %v635, %v642
        %v644 = vmul.f32 %v643, 1.442695
        %v645 = vpow.pop %v644
        %v646 = vsel %vm524, %v645, 0.0
        %647 = vadd.xlane.f32.xlu0 %v646
        %v648 = vpop.xlane.xlu0 %647
        %v649 = vrcp.pop %v648
        %v650 = vmul.f32 %v645, %v649
        %v651 = vpack.c.bf16 %v650, %v650
        %652 = vrot.lane.b32.xlu0 %v473, 56
        %v653 = vpop.permute.xlu0 %652
        %v655 = vsel %vm539, %v651, 0
        %v658 = vand.u32 %v653, %v546
        %660 = vmatprep.subr.bf16.mxu0 0
        %661 = vmatpush1.bf16.msra.mxu0 %v658
        %662 = vmatprep.subr.bf16.mxu0 0
        %663 = vmatpush1.bf16.msra.mxu0 0
        %664 = vmatprep.subr.bf16.mxu0 0
        %665 = vmatpush1.bf16.msra.mxu0 0
        %666 = vmatprep.subr.bf16.mxu0 0
        %667 = vmatpush1.bf16.msra.mxu0 0
        %668 = vmatprep.subr.bf16.mxu0 0
        %669 = vmatpush1.bf16.msra.mxu0 0
        %670 = vmatprep.subr.bf16.mxu0 0
        %671 = vmatpush1.bf16.msra.mxu0 0
        %672 = vmatprep.subr.bf16.mxu0 0
        %673 = vmatpush1.bf16.msra.mxu0 0
        %674 = vmatprep.subr.bf16.mxu0 0
        %675 = vmatpush1.bf16.msra.mxu0 0
        %676 = vmatprep.subr.bf16.mxu0 0
        %677 = vmatpush1.bf16.msra.mxu0 0
        %678 = vmatprep.subr.bf16.mxu0 0
        %679 = vmatpush1.bf16.msra.mxu0 0
        %680 = vmatprep.subr.bf16.mxu0 0
        %681 = vmatpush1.bf16.msra.mxu0 0
        %682 = vmatprep.subr.bf16.mxu0 0
        %683 = vmatpush1.bf16.msra.mxu0 0
        %684 = vmatprep.subr.bf16.mxu0 0
        %685 = vmatpush1.bf16.msra.mxu0 0
        %686 = vmatprep.subr.bf16.mxu0 0
        %687 = vmatpush1.bf16.msra.mxu0 0
        %688 = vmatprep.subr.bf16.mxu0 0
        %689 = vmatpush1.bf16.msra.mxu0 0
        %690 = vmatprep.subr.bf16.mxu0 0
        %691 = vmatpush1.bf16.msra.mxu0 0
        %692 = vmatprep.mubr.bf16.mxu0 0
        %693 = vmatmul.mubr.bf16.gmra.mrb[0].mxu0 %v655
        %v694 = vpop.f32.mrb[0].mxu0
        %v695 = vadd.f32 0.0, %v694
        %v696 = vpop.f32.mrb[0].mxu0
        %v697 = vpop.f32.mrb[0].mxu0
        %v698 = vpop.f32.mrb[0].mxu0
        %699 = vdwg.mxu0
        %700 = vrot.lane.b32.xlu0 %v473, 112
        %v701 = vpop.permute.xlu0 %700
        %702 = vrot.lane.b32.xlu0 %v473, 80
        %v703 = vpop.permute.xlu0 %702
        %v705 = vsel %vm477, %v701, 0
        %v708 = vsel %vm477, %v703, 0
        %710 = vmatprep.subr.bf16.mxu0 0
        %711 = vmatpush1.bf16.xpose.msra.mxu0 %v708
        %712 = vmatprep.subr.bf16.mxu0 0
        %713 = vmatpush1.bf16.xpose.msra.mxu0 0
        %714 = vmatprep.subr.bf16.mxu0 0
        %715 = vmatpush1.bf16.xpose.msra.mxu0 0
        %716 = vmatprep.subr.bf16.mxu0 0
        %717 = vmatpush1.bf16.xpose.msra.mxu0 0
        %718 = vmatprep.subr.bf16.mxu0 0
        %719 = vmatpush1.bf16.xpose.msra.mxu0 0
        %720 = vmatprep.subr.bf16.mxu0 0
        %721 = vmatpush1.bf16.xpose.msra.mxu0 0
        %722 = vmatprep.subr.bf16.mxu0 0
        %723 = vmatpush1.bf16.xpose.msra.mxu0 0
        %724 = vmatprep.subr.bf16.mxu0 0
        %725 = vmatpush1.bf16.xpose.msra.mxu0 0
        %726 = vmatprep.subr.bf16.mxu0 0
        %727 = vmatpush1.bf16.xpose.msra.mxu0 0
        %728 = vmatprep.subr.bf16.mxu0 0
        %729 = vmatpush1.bf16.xpose.msra.mxu0 0
        %730 = vmatprep.subr.bf16.mxu0 0
        %731 = vmatpush1.bf16.xpose.msra.mxu0 0
        %732 = vmatprep.subr.bf16.mxu0 0
        %733 = vmatpush1.bf16.xpose.msra.mxu0 0
        %734 = vmatprep.subr.bf16.mxu0 0
        %735 = vmatpush1.bf16.xpose.msra.mxu0 0
        %736 = vmatprep.subr.bf16.mxu0 0
        %737 = vmatpush1.bf16.xpose.msra.mxu0 0
        %738 = vmatprep.subr.bf16.mxu0 0
        %739 = vmatpush1.bf16.xpose.msra.mxu0 0
        %740 = vmatprep.subr.bf16.mxu0 0
        %741 = vmatpush1.bf16.xpose.msra.mxu0 0
        %742 = vmatprep.mubr.bf16.mxu0 0
        %743 = vmatmul.mubr.bf16.gmra.mrb[0].mxu0 %v705
        %v744 = vpop.f32.mrb[0].mxu0
        %v745 = vadd.f32 0.0, %v744
        %v746 = vpop.f32.mrb[0].mxu0
        %v747 = vpop.f32.mrb[0].mxu0
        %v748 = vpop.f32.mrb[0].mxu0
        %749 = vdwg.mxu0
        %v750 = vsel %vm524, %v745, -inf
        %751 = vmax.xlane.f32.xlu0 %v750
        %v752 = vpop.xlane.xlu0 %751
        %v753 = vsub.f32 %v745, %v752
        %v754 = vmul.f32 %v753, 1.442695
        %v755 = vpow.pop %v754
        %v756 = vsel %vm524, %v755, 0.0
        %757 = vadd.xlane.f32.xlu0 %v756
        %v758 = vpop.xlane.xlu0 %757
        %v759 = vrcp.pop %v758
        %v760 = vmul.f32 %v755, %v759
        %v761 = vpack.c.bf16 %v760, %v760
        %762 = vrot.lane.b32.xlu0 %v473, 48
        %v763 = vpop.permute.xlu0 %762
        %v765 = vsel %vm539, %v761, 0
        %v768 = vand.u32 %v763, %v546
        %770 = vmatprep.subr.bf16.mxu0 0
        %771 = vmatpush1.bf16.msra.mxu0 %v768
        %772 = vmatprep.subr.bf16.mxu0 0
        %773 = vmatpush1.bf16.msra.mxu0 0
        %774 = vmatprep.subr.bf16.mxu0 0
        %775 = vmatpush1.bf16.msra.mxu0 0
        %776 = vmatprep.subr.bf16.mxu0 0
        %777 = vmatpush1.bf16.msra.mxu0 0
        %778 = vmatprep.subr.bf16.mxu0 0
        %779 = vmatpush1.bf16.msra.mxu0 0
        %780 = vmatprep.subr.bf16.mxu0 0
        %781 = vmatpush1.bf16.msra.mxu0 0
        %782 = vmatprep.subr.bf16.mxu0 0
        %783 = vmatpush1.bf16.msra.mxu0 0
        %784 = vmatprep.subr.bf16.mxu0 0
        %785 = vmatpush1.bf16.msra.mxu0 0
        %786 = vmatprep.subr.bf16.mxu0 0
        %787 = vmatpush1.bf16.msra.mxu0 0
        %788 = vmatprep.subr.bf16.mxu0 0
        %789 = vmatpush1.bf16.msra.mxu0 0
        %790 = vmatprep.subr.bf16.mxu0 0
        %791 = vmatpush1.bf16.msra.mxu0 0
        %792 = vmatprep.subr.bf16.mxu0 0
        %793 = vmatpush1.bf16.msra.mxu0 0
        %794 = vmatprep.subr.bf16.mxu0 0
        %795 = vmatpush1.bf16.msra.mxu0 0
        %796 = vmatprep.subr.bf16.mxu0 0
        %797 = vmatpush1.bf16.msra.mxu0 0
        %798 = vmatprep.subr.bf16.mxu0 0
        %799 = vmatpush1.bf16.msra.mxu0 0
        %800 = vmatprep.subr.bf16.mxu0 0
        %801 = vmatpush1.bf16.msra.mxu0 0
        %802 = vmatprep.mubr.bf16.mxu0 0
        %803 = vmatmul.mubr.bf16.gmra.mrb[0].mxu0 %v765
        %v804 = vpop.f32.mrb[0].mxu0
        %v805 = vadd.f32 0.0, %v804
        %v806 = vpop.f32.mrb[0].mxu0
        %v807 = vpop.f32.mrb[0].mxu0
        %v808 = vpop.f32.mrb[0].mxu0
        %809 = vdwg.mxu0
        %810 = vrot.lane.b32.xlu0 %v473, 104
        %v811 = vpop.permute.xlu0 %810
        %812 = vrot.lane.b32.xlu0 %v473, 72
        %v813 = vpop.permute.xlu0 %812
        %v815 = vsel %vm477, %v811, 0
        %v818 = vsel %vm477, %v813, 0
        %820 = vmatprep.subr.bf16.mxu0 0
        %821 = vmatpush1.bf16.xpose.msra.mxu0 %v818
        %822 = vmatprep.subr.bf16.mxu0 0
        %823 = vmatpush1.bf16.xpose.msra.mxu0 0
        %824 = vmatprep.subr.bf16.mxu0 0
        %825 = vmatpush1.bf16.xpose.msra.mxu0 0
        %826 = vmatprep.subr.bf16.mxu0 0
        %827 = vmatpush1.bf16.xpose.msra.mxu0 0
        %828 = vmatprep.subr.bf16.mxu0 0
        %829 = vmatpush1.bf16.xpose.msra.mxu0 0
        %830 = vmatprep.subr.bf16.mxu0 0
        %831 = vmatpush1.bf16.xpose.msra.mxu0 0
        %832 = vmatprep.subr.bf16.mxu0 0
        %833 = vmatpush1.bf16.xpose.msra.mxu0 0
        %834 = vmatprep.subr.bf16.mxu0 0
        %835 = vmatpush1.bf16.xpose.msra.mxu0 0
        %836 = vmatprep.subr.bf16.mxu0 0
        %837 = vmatpush1.bf16.xpose.msra.mxu0 0
        %838 = vmatprep.subr.bf16.mxu0 0
        %839 = vmatpush1.bf16.xpose.msra.mxu0 0
        %840 = vmatprep.subr.bf16.mxu0 0
        %841 = vmatpush1.bf16.xpose.msra.mxu0 0
        %842 = vmatprep.subr.bf16.mxu0 0
        %843 = vmatpush1.bf16.xpose.msra.mxu0 0
        %844 = vmatprep.subr.bf16.mxu0 0
        %845 = vmatpush1.bf16.xpose.msra.mxu0 0
        %846 = vmatprep.subr.bf16.mxu0 0
        %847 = vmatpush1.bf16.xpose.msra.mxu0 0
        %848 = vmatprep.subr.bf16.mxu0 0
        %849 = vmatpush1.bf16.xpose.msra.mxu0 0
        %850 = vmatprep.subr.bf16.mxu0 0
        %851 = vmatpush1.bf16.xpose.msra.mxu0 0
        %852 = vmatprep.mubr.bf16.mxu0 0
        %853 = vmatmul.mubr.bf16.gmra.mrb[0].mxu0 %v815
        %v854 = vpop.f32.mrb[0].mxu0
        %v855 = vadd.f32 0.0, %v854
        %v856 = vpop.f32.mrb[0].mxu0
        %v857 = vpop.f32.mrb[0].mxu0
        %v858 = vpop.f32.mrb[0].mxu0
        %859 = vdwg.mxu0
        %v860 = vsel %vm524, %v855, -inf
        %861 = vmax.xlane.f32.xlu0 %v860
        %v862 = vpop.xlane.xlu0 %861
        %v863 = vsub.f32 %v855, %v862
        %v864 = vmul.f32 %v863, 1.442695
        %v865 = vpow.pop %v864
        %v866 = vsel %vm524, %v865, 0.0
        %867 = vadd.xlane.f32.xlu0 %v866
        %v868 = vpop.xlane.xlu0 %867
        %v869 = vrcp.pop %v868
        %v870 = vmul.f32 %v865, %v869
        %v871 = vpack.c.bf16 %v870, %v870
        %872 = vrot.lane.b32.xlu0 %v473, 40
        %v873 = vpop.permute.xlu0 %872
        %v875 = vsel %vm539, %v871, 0
        %v878 = vand.u32 %v873, %v546
        %880 = vmatprep.subr.bf16.mxu0 0
        %881 = vmatpush1.bf16.msra.mxu0 %v878
        %882 = vmatprep.subr.bf16.mxu0 0
        %883 = vmatpush1.bf16.msra.mxu0 0
        %884 = vmatprep.subr.bf16.mxu0 0
        %885 = vmatpush1.bf16.msra.mxu0 0
        %886 = vmatprep.subr.bf16.mxu0 0
        %887 = vmatpush1.bf16.msra.mxu0 0
        %888 = vmatprep.subr.bf16.mxu0 0
        %889 = vmatpush1.bf16.msra.mxu0 0
        %890 = vmatprep.subr.bf16.mxu0 0
        %891 = vmatpush1.bf16.msra.mxu0 0
        %892 = vmatprep.subr.bf16.mxu0 0
        %893 = vmatpush1.bf16.msra.mxu0 0
        %894 = vmatprep.subr.bf16.mxu0 0
        %895 = vmatpush1.bf16.msra.mxu0 0
        %896 = vmatprep.subr.bf16.mxu0 0
        %897 = vmatpush1.bf16.msra.mxu0 0
        %898 = vmatprep.subr.bf16.mxu0 0
        %899 = vmatpush1.bf16.msra.mxu0 0
        %900 = vmatprep.subr.bf16.mxu0 0
        %901 = vmatpush1.bf16.msra.mxu0 0
        %902 = vmatprep.subr.bf16.mxu0 0
        %903 = vmatpush1.bf16.msra.mxu0 0
        %904 = vmatprep.subr.bf16.mxu0 0
        %905 = vmatpush1.bf16.msra.mxu0 0
        %906 = vmatprep.subr.bf16.mxu0 0
        %907 = vmatpush1.bf16.msra.mxu0 0
        %908 = vmatprep.subr.bf16.mxu0 0
        %909 = vmatpush1.bf16.msra.mxu0 0
        %910 = vmatprep.subr.bf16.mxu0 0
        %911 = vmatpush1.bf16.msra.mxu0 0
        %912 = vmatprep.mubr.bf16.mxu0 0
        %913 = vmatmul.mubr.bf16.gmra.mrb[0].mxu0 %v875
        %v914 = vpop.f32.mrb[0].mxu0
        %v915 = vadd.f32 0.0, %v914
        %v916 = vpop.f32.mrb[0].mxu0
        %v917 = vpop.f32.mrb[0].mxu0
        %v918 = vpop.f32.mrb[0].mxu0
        %919 = vdwg.mxu0
        %921 = vrot.lane.b32.xlu0 %v695, 8
        %v922 = vpop.permute.xlu0 %921
        %925 = vrot.lane.b32.xlu0 %v805, 16
        %v926 = vpop.permute.xlu0 %925
        %929 = vrot.lane.b32.xlu0 %v915, 24
        %v930 = vpop.permute.xlu0 %929
        %v932 = vsel %vm477, %v585, %v922
        %vm933 = vcmask 130048
        %v934 = vsel %vm933, %v932, %v926
        %vm935 = vcmask 195584
        %v936 = vsel %vm935, %v934, %v930
        %v937 = vpack.c.bf16 %v936, %v936
        %v938 = vld [vmem:[%s296 + $0x4] sm:$0x1]
        %v939 = vld [vmem:[%s361] sm:$0xf]
        %v940 = vld [vmem:[%s361 + $0x4] sm:$0xf]
        %v941 = vld [vmem:[%s361 + $0x8] sm:$0xf]
        %v942 = vld [vmem:[%s361 + $0xc] sm:$0xf]
        %v947 = vunpack.c.l.b16 %v939
        %v948 = vunpack.c.l.b16 %v940
        %v949 = vunpack.c.l.b16 %v941
        %v950 = vunpack.c.l.b16 %v942
        %v951 = vpack.c.b16 %v948, %v947
        %v952 = vpack.c.b16 %v950, %v949
        %v956 = vsel %vm429, %v937, 0
        %958 = vmatprep.subr.bf16.mxu0 0
        %959 = vmatpush1.bf16.msra.mxu0 %v951
        %960 = vmatprep.subr.bf16.mxu0 0
        %961 = vmatpush1.bf16.msra.mxu0 %v952
        %962 = vmatprep.subr.bf16.mxu0 0
        %963 = vmatpush1.bf16.msra.mxu0 0
        %964 = vmatprep.subr.bf16.mxu0 0
        %965 = vmatpush1.bf16.msra.mxu0 0
        %966 = vmatprep.subr.bf16.mxu0 0
        %967 = vmatpush1.bf16.msra.mxu0 0
        %968 = vmatprep.subr.bf16.mxu0 0
        %969 = vmatpush1.bf16.msra.mxu0 0
        %970 = vmatprep.subr.bf16.mxu0 0
        %971 = vmatpush1.bf16.msra.mxu0 0
        %972 = vmatprep.subr.bf16.mxu0 0
        %973 = vmatpush1.bf16.msra.mxu0 0
        %974 = vmatprep.subr.bf16.mxu0 0
        %975 = vmatpush1.bf16.msra.mxu0 0
        %976 = vmatprep.subr.bf16.mxu0 0
        %977 = vmatpush1.bf16.msra.mxu0 0
        %978 = vmatprep.subr.bf16.mxu0 0
        %979 = vmatpush1.bf16.msra.mxu0 0
        %980 = vmatprep.subr.bf16.mxu0 0
        %981 = vmatpush1.bf16.msra.mxu0 0
        %982 = vmatprep.subr.bf16.mxu0 0
        %983 = vmatpush1.bf16.msra.mxu0 0
        %984 = vmatprep.subr.bf16.mxu0 0
        %985 = vmatpush1.bf16.msra.mxu0 0
        %986 = vmatprep.subr.bf16.mxu0 0
        %987 = vmatpush1.bf16.msra.mxu0 0
        %988 = vmatprep.subr.bf16.mxu0 0
        %989 = vmatpush1.bf16.msra.mxu0 0
        %990 = vmatprep.mubr.bf16.mxu0 0
        %991 = vmatmul.mubr.bf16.gmra.mrb[0].mxu0 %v956
        %v992 = vpop.f32.mrb[0].mxu0
        %v993 = vadd.f32 0.0, %v992
        %v994 = vpop.f32.mrb[0].mxu0
        %v995 = vpop.f32.mrb[0].mxu0
        %v996 = vpop.f32.mrb[0].mxu0
        %997 = vdwg.mxu0
        %v998 = vadd.f32 %v384, %v993
        %v999 = vlaneseq
        %v1000 = vshrl.u32 %v999, 7
        %v1001 = vsub.s32 0, %v1000
        %v1002 = vrot.slane %v938, %v1001
        %v1003 = vadd.f32 %v998, %v1002
        %v1004 = vld [vmem:[%s296 + $0x2] sm:$0x1]
        %v1005 = vld [vmem:[%s296 + $0x3] sm:$0x1]
        %v1006 = vld [vmem:[%s296 + $0x5] sm:$0x1]
        %v1007 = vld [vmem:[%s296 + $0x6] sm:$0x1]
        %v1008 = vsel %vm387, %v1003, 0.0
        %1009 = vadd.xlane.f32.xlu0 %v1008
        %v1010 = vpop.xlane.xlu0 %1009
        %v1011 = vmul.f32 %v1010, %v391
        %v1012 = vsub.f32 %v1003, %v1011
        %v1013 = vmul.f32 %v1012, %v1012
        %v1014 = vsel %vm387, %v1013, 0.0
        %1015 = vadd.xlane.f32.xlu0 %v1014
        %v1016 = vpop.xlane.xlu0 %1015
        %v1017 = vmul.f32 %v1016, %v391
        %v1018 = vadd.f32 %v1017, 1e-05
        %v1019 = vrsqrt.pop %v1018
        %v1020 = vmul.f32 %v1012, %v1019
        %v1021 = vlaneseq
        %v1022 = vshrl.u32 %v1021, 7
        %v1023 = vsub.s32 0, %v1022
        %v1024 = vrot.slane %v1004, %v1023
        %v1025 = vmul.f32 %v1020, %v1024
        %v1026 = vlaneseq
        %v1027 = vshrl.u32 %v1026, 7
        %v1028 = vsub.s32 0, %v1027
        %v1029 = vrot.slane %v1005, %v1028
        %v1030 = vadd.f32 %v1025, %v1029
        %v1031 = vpack.c.bf16 %v1030, %v1030
        %v1032 = vld [vmem:[%s366] sm:$0xf]
        %v1033 = vld [vmem:[%s366 + $0x4] sm:$0xf]
        %v1034 = vld [vmem:[%s366 + $0x8] sm:$0xf]
        %v1035 = vld [vmem:[%s366 + $0xc] sm:$0xf]
        %v1036 = vlaneseq
        %v1037 = vshrl.u32 %v1036, 7
        %v1038 = vsub.s32 0, %v1037
        %v1039 = vrot.slane %v1006, %v1038
        %v1044 = vunpack.c.l.b16 %v1032
        %v1045 = vunpack.c.l.b16 %v1033
        %v1046 = vunpack.c.l.b16 %v1034
        %v1047 = vunpack.c.l.b16 %v1035
        %v1048 = vpack.c.b16 %v1045, %v1044
        %v1049 = vpack.c.b16 %v1047, %v1046
        %v1053 = vsel %vm429, %v1031, 0
        %1055 = vmatprep.subr.bf16.mxu0 0
        %1056 = vmatpush1.bf16.msra.mxu0 %v1048
        %1057 = vmatprep.subr.bf16.mxu0 0
        %1058 = vmatpush1.bf16.msra.mxu0 %v1049
        %1059 = vmatprep.subr.bf16.mxu0 0
        %1060 = vmatpush1.bf16.msra.mxu0 0
        %1061 = vmatprep.subr.bf16.mxu0 0
        %1062 = vmatpush1.bf16.msra.mxu0 0
        %1063 = vmatprep.subr.bf16.mxu0 0
        %1064 = vmatpush1.bf16.msra.mxu0 0
        %1065 = vmatprep.subr.bf16.mxu0 0
        %1066 = vmatpush1.bf16.msra.mxu0 0
        %1067 = vmatprep.subr.bf16.mxu0 0
        %1068 = vmatpush1.bf16.msra.mxu0 0
        %1069 = vmatprep.subr.bf16.mxu0 0
        %1070 = vmatpush1.bf16.msra.mxu0 0
        %1071 = vmatprep.subr.bf16.mxu0 0
        %1072 = vmatpush1.bf16.msra.mxu0 0
        %1073 = vmatprep.subr.bf16.mxu0 0
        %1074 = vmatpush1.bf16.msra.mxu0 0
        %1075 = vmatprep.subr.bf16.mxu0 0
        %1076 = vmatpush1.bf16.msra.mxu0 0
        %1077 = vmatprep.subr.bf16.mxu0 0
        %1078 = vmatpush1.bf16.msra.mxu0 0
        %1079 = vmatprep.subr.bf16.mxu0 0
        %1080 = vmatpush1.bf16.msra.mxu0 0
        %1081 = vmatprep.subr.bf16.mxu0 0
        %1082 = vmatpush1.bf16.msra.mxu0 0
        %1083 = vmatprep.subr.bf16.mxu0 0
        %1084 = vmatpush1.bf16.msra.mxu0 0
        %1085 = vmatprep.subr.bf16.mxu0 0
        %1086 = vmatpush1.bf16.msra.mxu0 0
        %1087 = vmatprep.mubr.bf16.mxu0 0
        %1088 = vmatmul.mubr.bf16.gmra.mrb[0].mxu0 %v1053
        %v1089 = vpop.f32.mrb[0].mxu0
        %v1090 = vadd.f32 %v1039, %v1089
        %v1091 = vpop.f32.mrb[0].mxu0
        %v1092 = vpop.f32.mrb[0].mxu0
        %v1093 = vpop.f32.mrb[0].mxu0
        %1094 = vdwg.mxu0
        %v1095 = vmul.f32 %v1090, 0.5
        %v1096 = vmul.f32 %v1090, 0.70710677
        %v1097 = verf.f32.pop %v1096
        %v1098 = vadd.f32 %v1097, 1.0
        %v1099 = vmul.f32 %v1095, %v1098
        %v1100 = vpack.c.bf16 %v1099, %v1099
        %v1101 = vld [vmem:[%s371] sm:$0xf]
        %v1102 = vld [vmem:[%s371 + $0x4] sm:$0xf]
        %v1103 = vld [vmem:[%s371 + $0x8] sm:$0xf]
        %v1104 = vld [vmem:[%s371 + $0xc] sm:$0xf]
        %v1105 = vld [vmem:[%s371 + $0x10] sm:$0xf]
        %v1106 = vld [vmem:[%s371 + $0x14] sm:$0xf]
        %v1107 = vld [vmem:[%s371 + $0x18] sm:$0xf]
        %v1108 = vld [vmem:[%s371 + $0x1c] sm:$0xf]
        %v1109 = vlaneseq
        %v1110 = vshrl.u32 %v1109, 7
        %v1111 = vsub.s32 0, %v1110
        %v1112 = vrot.slane %v1007, %v1111
        %v1121 = vunpack.c.l.b16 %v1101
        %v1122 = vunpack.c.l.b16 %v1102
        %v1123 = vunpack.c.l.b16 %v1103
        %v1124 = vunpack.c.l.b16 %v1104
        %v1125 = vunpack.c.l.b16 %v1105
        %v1126 = vunpack.c.l.b16 %v1106
        %v1127 = vunpack.c.l.b16 %v1107
        %v1128 = vunpack.c.l.b16 %v1108
        %v1129 = vpack.c.b16 %v1122, %v1121
        %v1130 = vpack.c.b16 %v1124, %v1123
        %v1131 = vpack.c.b16 %v1126, %v1125
        %v1132 = vpack.c.b16 %v1128, %v1127
        %vm1137 = vcmask 523264
        %v1139 = vsel %vm1137, %v1100, 0
        %1141 = vmatprep.subr.bf16.mxu0 0
        %1142 = vmatpush1.bf16.msra.mxu0 %v1129
        %1143 = vmatprep.subr.bf16.mxu0 0
        %1144 = vmatpush1.bf16.msra.mxu0 %v1130
        %1145 = vmatprep.subr.bf16.mxu0 0
        %1146 = vmatpush1.bf16.msra.mxu0 %v1131
        %1147 = vmatprep.subr.bf16.mxu0 0
        %1148 = vmatpush1.bf16.msra.mxu0 %v1132
        %1149 = vmatprep.subr.bf16.mxu0 0
        %1150 = vmatpush1.bf16.msra.mxu0 0
        %1151 = vmatprep.subr.bf16.mxu0 0
        %1152 = vmatpush1.bf16.msra.mxu0 0
        %1153 = vmatprep.subr.bf16.mxu0 0
        %1154 = vmatpush1.bf16.msra.mxu0 0
        %1155 = vmatprep.subr.bf16.mxu0 0
        %1156 = vmatpush1.bf16.msra.mxu0 0
        %1157 = vmatprep.subr.bf16.mxu0 0
        %1158 = vmatpush1.bf16.msra.mxu0 0
        %1159 = vmatprep.subr.bf16.mxu0 0
        %1160 = vmatpush1.bf16.msra.mxu0 0
        %1161 = vmatprep.subr.bf16.mxu0 0
        %1162 = vmatpush1.bf16.msra.mxu0 0
        %1163 = vmatprep.subr.bf16.mxu0 0
        %1164 = vmatpush1.bf16.msra.mxu0 0
        %1165 = vmatprep.subr.bf16.mxu0 0
        %1166 = vmatpush1.bf16.msra.mxu0 0
        %1167 = vmatprep.subr.bf16.mxu0 0
        %1168 = vmatpush1.bf16.msra.mxu0 0
        %1169 = vmatprep.subr.bf16.mxu0 0
        %1170 = vmatpush1.bf16.msra.mxu0 0
        %1171 = vmatprep.subr.bf16.mxu0 0
        %1172 = vmatpush1.bf16.msra.mxu0 0
        %1173 = vmatprep.mubr.bf16.mxu0 0
        %1174 = vmatmul.mubr.bf16.gmra.mrb[0].mxu0 %v1139
        %v1175 = vpop.f32.mrb[0].mxu0
        %v1176 = vadd.f32 %v1112, %v1175
        %v1177 = vpop.f32.mrb[0].mxu0
        %v1178 = vpop.f32.mrb[0].mxu0
        %v1179 = vpop.f32.mrb[0].mxu0
        %1180 = vdwg.mxu0
        %v1181 = vadd.f32 %v1003, %v1176
        %1182 = vst.msk [vmem:[#allocation2] sm:$0x1f] %vm387, %v1181
        %p1183 = scmp.eq.s32.totalorder %s25, 1
        // Predicated region
        $region53: #{tpu_custom_call.1} parent=43 // pred_check
          %p1184 = pneg %p1183
        $region54: #{tpu_custom_call.1} parent=43 // pred_check_branch
          %1186 = sbr.rel (%p1184) target = $region56
        $region55: #{tpu_custom_call.1} parent=43 // pred_region
          %1187 = vst.msk [vmem:[%s375] sm:$0x1f] %vm387, %v1181
        $region56: #{tpu_custom_call.1} parent=43 // pred_fallthru
          _
        %p1188 = scmp.lt.s32.totalorder %s24, 1
        %s1189 = scalar_select %p1188, %s24, 1
        %s1190 = smul.addr %s1189, 8
        %s1191 = scalar_lea.vmem %s6, %s1190
        // Predicated region
        $region57: #{tpu_custom_call.1} parent=43 // pred_check
          %p1192 = pneg %p206
        $region58: #{tpu_custom_call.1} parent=43 // pred_check_branch
          %1194 = sbr.rel (%p1192) target = $region60
        $region59: #{tpu_custom_call.1} parent=43 // pred_region
          _
        $region60: #{tpu_custom_call.1} parent=43 // pred_fallthru
          _
      $region44: #{tpu_custom_call.1} parent=5 // pred_fallthru
        _
      %p1195 = scmp.le.s32.totalorder 2, %s15
      // Predicated region
      $region61: #{tpu_custom_call.1} parent=5 // pred_check
        %p1196 = pneg %p1195
      $region62: #{tpu_custom_call.1} parent=5 // pred_check_branch
        %1198 = sbr.rel (%p1196) target = $region64
      $region63: #{tpu_custom_call.1} parent=5 // pred_region
        %s1199 = ssub.s32 %s15, 2
        // Predicated region
        $region65: #{tpu_custom_call.1} parent=63 // pred_check
          %p1200 = pneg %p212
        $region66: #{tpu_custom_call.1} parent=63 // pred_check_branch
          %1202 = sbr.rel (%p1200) target = $region68
        $region67: #{tpu_custom_call.1} parent=63 // pred_region
          %p1203 = scmp.lt.s32.totalorder %s26, 1
          %s1204 = scalar_select %p1203, %s26, 1
          %s1205 = smul.addr %s1204, 8
          %s1206 = scalar_lea.vmem %s6, %s1205
        $region68: #{tpu_custom_call.1} parent=63 // pred_fallthru
          _
      $region64: #{tpu_custom_call.1} parent=5 // pred_fallthru
        _
    $region6: #{tpu_custom_call.1} parent=1 // loop_footer
      %s19 = sadd.s32 1, %s15
    $region7: #{tpu_custom_call.1} parent=1 // loop_footer_branch
      %14 = sbr.rel target = $region3
    $region8: #{tpu_custom_call.1} parent=1 // loop_exit
      _
    %1207 = vsyncpa [#allocation4], 1
    %s1208 = scalar_lea.sflag [#allocation4], 1
    %1209 = vsyncpa %s1208, 1

</llo_original>
